<compile_context>
chip_gen: v7x
topology: tpu7x:2x2x1
jax: 0.10.0
libtpu: 0.0.40
codegen_flags: <defaults>
</compile_context>

<pallas_src>
import functools

import jax
import jax.numpy as jnp
from jax.experimental import pallas as pl
from jax.experimental.pallas import tpu as pltpu

H = 6        # hidden_size
I = 2        # input_size
G = 4 * H    # gate width


def lstm_kernel(x_ref, w0_ref, wih1T_ref, whh1T_ref, b01_ref, wl_ref,
                out_ref,
                pre0_ref, hs_ref,
                *, seq_len, batch):
    """Whole 2-layer LSTM + fused Linear(6,1) in a single kernel invocation.

    x_ref:     (S*B, I)   flattened input sequence
    w0_ref:    (I+H, 4H)  [W_ih0^T ; W_hh0^T]
    wih1T_ref: (H, 4H)    W_ih1^T
    whh1T_ref: (H, 4H)    W_hh1^T
    b01_ref:   (2, 4H)    [b_ih0+b_hh0 ; b_ih1+b_hh1]
    wl_ref:    (H+1, 1)   [W_lin^T ; b_lin]
    out_ref:   (S*B, 1)
    pre0_ref:  (S*B, 4H)  VMEM scratch: hoisted layer-1 input projection
    hs_ref:    (S*B, H)   VMEM scratch: stacked layer-2 hidden states
    """
    S, B = seq_len, batch

    # Load weights once (static sublane slices, each within one (8,128) tile).
    wih0T = w0_ref[0:I, :]           # (I, 4H)
    whh0T = w0_ref[I:I + H, :]       # (H, 4H)
    wih1T = wih1T_ref[...]           # (H, 4H)
    whh1T = whh1T_ref[...]           # (H, 4H)
    b0 = b01_ref[0:1, :]             # (1, 4H)
    b1 = b01_ref[1:2, :]             # (1, 4H)

    # Hoisted: layer-1 input projection for the whole sequence (one matmul,
    # no recurrent dependency).
    pre0_ref[...] = (
        jnp.dot(x_ref[...], wih0T, preferred_element_type=jnp.float32) + b0
    )                                 # (S*B, 4H)

    def gates_to_hc(g, c):
        # One sigmoid + one tanh over the full (B, 4H) vreg; the g-gate lanes
        # are taken from the tanh result (PyTorch gate order i, f, g, o).
        sg = jax.nn.sigmoid(g)
        th = jnp.tanh(g)
        i_g = sg[:, 0:H]
        f_g = sg[:, H:2 * H]
        g_g = th[:, 2 * H:3 * H]
        o_g = sg[:, 3 * H:4 * H]
        c_new = f_g * c + i_g * g_g
        h_new = o_g * jnp.tanh(c_new)
        return h_new, c_new

    zero = jnp.zeros((B, H), jnp.float32)
    h1, c1, h2, c2 = zero, zero, zero, zero

    # Static trip count -> fully unrolled straight-line code for the scheduler.
    for t in range(S):
        # Layer-2 recurrent half depends only on the *previous* h2, so it is off
        # the h1 critical path and can overlap with layer-1 compute of this step.
        g2_rec = jnp.dot(h2, whh1T, preferred_element_type=jnp.float32) + b1
        # Layer 1: only the h @ W_hh matmul remains on the serial recurrence.
        g1 = pre0_ref[t * B:(t + 1) * B, :] + jnp.dot(
            h1, whh0T, preferred_element_type=jnp.float32)
        h1, c1 = gates_to_hc(g1, c1)
        # TODO(synk): nn.LSTM dropout=0.2 between layers only applies in training
        # mode; eval-mode (inference) semantics are implemented here (no dropout).
        g2 = g2_rec + jnp.dot(h1, wih1T, preferred_element_type=jnp.float32)
        h2, c2 = gates_to_hc(g2, c2)
        hs_ref[t * B:(t + 1) * B, :] = h2

    # Fused Linear(6, 1) over all time steps at once: one matmul, one store.
    wlinT = wl_ref[0:H, :]            # (H, 1)
    blin = wl_ref[H:H + 1, :]         # (1, 1)
    out_ref[...] = (
        jnp.dot(hs_ref[...], wlinT, preferred_element_type=jnp.float32) + blin
    )


def lstm_forward(x, params):
    S, B, _ = x.shape
    w0, wih1T, whh1T, b01, wl = params
    x2d = x.reshape(S * B, I)        # contiguous reshape; free

    kernel = functools.partial(lstm_kernel, seq_len=S, batch=B)
    out = pl.pallas_call(
        kernel,
        out_shape=jax.ShapeDtypeStruct((S * B, 1), jnp.float32),
        scratch_shapes=[
            pltpu.VMEM((S * B, G), jnp.float32),   # hoisted layer-1 input gates
            pltpu.VMEM((S * B, H), jnp.float32),   # stacked layer-2 hidden states
        ],
    )(x2d, w0, wih1T, whh1T, b01, wl)
    # x.view(-1, h) then Linear  ==  result is already (S*B, 1)
    return out


def lstm_ref(x, params):
    """Pure-JAX reference (lax.scan) for correctness checking."""
    w0, wih1T, whh1T, b01, wl = params
    wih0T, whh0T = w0[:I], w0[I:]
    b0, b1 = b01[0:1], b01[1:2]
    wlinT, blin = wl[:H], wl[H:]
    S, B, _ = x.shape

    def cell(inp, h, c, wihT, whhT, b):
        g = inp @ wihT + h @ whhT + b
        i = jax.nn.sigmoid(g[:, :H])
        f = jax.nn.sigmoid(g[:, H:2 * H])
        gg = jnp.tanh(g[:, 2 * H:3 * H])
        o = jax.nn.sigmoid(g[:, 3 * H:])
        c = f * c + i * gg
        h = o * jnp.tanh(c)
        return h, c

    def step(carry, xt):
        h1, c1, h2, c2 = carry
        h1, c1 = cell(xt, h1, c1, wih0T, whh0T, b0)
        h2, c2 = cell(h1, h2, c2, wih1T, whh1T, b1)
        return (h1, c1, h2, c2), h2

    init = tuple(jnp.zeros((B, H), jnp.float32) for _ in range(4))
    _, hs = jax.lax.scan(step, init, x)               # (S, B, H)
    return hs.reshape(S * B, H) @ wlinT + blin        # (S*B, 1)


def make_params(key):
    """Deterministic synthetic parameters with PyTorch-like U(-1/sqrt(H), 1/sqrt(H)) init,
    pre-transposed / pre-packed for the kernel."""
    bound = 1.0 / jnp.sqrt(jnp.float32(H))
    keys = jax.random.split(key, 10)
    u = lambda k, shape: jax.random.uniform(k, shape, jnp.float32, -bound, bound)

    # Layer 0: W_ih (4H, I), W_hh (4H, H), b_ih + b_hh (4H,)
    wih0 = u(keys[0], (4 * H, I))
    whh0 = u(keys[1], (4 * H, H))
    b0 = (u(keys[2], (4 * H,)) + u(keys[3], (4 * H,))).reshape(1, 4 * H)
    # Layer 1: W_ih (4H, H), W_hh (4H, H)
    wih1 = u(keys[4], (4 * H, H))
    whh1 = u(keys[5], (4 * H, H))
    b1 = (u(keys[6], (4 * H,)) + u(keys[7], (4 * H,))).reshape(1, 4 * H)
    # Linear(6, 1)
    wlin = u(keys[8], (1, H))
    blin = u(keys[9], (1,)).reshape(1, 1)

    # Pack (transposed) so the kernel does plain (B, K) @ (K, N) matmuls with
    # static, tile-local sublane slices.
    w0 = jnp.concatenate([wih0.T, whh0.T], axis=0)     # (I+H, 4H) = (8, 24)
    b01 = jnp.concatenate([b0, b1], axis=0)            # (2, 4H)
    wl = jnp.concatenate([wlin.T, blin], axis=0)       # (H+1, 1)
    return (w0, wih1.T, whh1.T, b01, wl)


if __name__ == "__main__":
    S, B = 8, 2
    key = jax.random.PRNGKey(0)
    k_x, k_p = jax.random.split(key)
    x = jax.random.normal(k_x, (S, B, I), jnp.float32)
    params = make_params(k_p)

    out = jax.block_until_ready(lstm_forward(x, params))
    ref = jax.block_until_ready(lstm_ref(x, params))

    assert out.shape == (S * B, 1), out.shape
    assert jnp.allclose(out, ref, atol=1e-5, rtol=1e-5), (out, ref)
    print("KERNEL_OK")
</pallas_src>

<mosaic_0001>
module attributes {stable_mosaic.version = 11 : i64} {
  func.func @lstm_kernel(%arg0: memref<16x2xf32, #tpu.memory_space<vmem>>, %arg1: memref<8x24xf32, #tpu.memory_space<vmem>>, %arg2: memref<6x24xf32, #tpu.memory_space<vmem>>, %arg3: memref<6x24xf32, #tpu.memory_space<vmem>>, %arg4: memref<2x24xf32, #tpu.memory_space<vmem>>, %arg5: memref<7x1xf32, #tpu.memory_space<vmem>>, %arg6: memref<16x1xf32, #tpu.memory_space<vmem>>, %arg7: memref<16x24xf32, #tpu.memory_space<vmem>>, %arg8: memref<16x6xf32, #tpu.memory_space<vmem>>) attributes {dimension_semantics = [], scalar_prefetch = 0 : i64, scratch_operands = 2 : i64, tpu.core_type = #tpu.core_type<tc>} {
    %c0 = arith.constant 0 : index
    %c0_0 = arith.constant 0 : index
    %0 = vector.load %arg1[%c0, %c0_0] : memref<8x24xf32, #tpu.memory_space<vmem>>, vector<2x24xf32>
    %c2 = arith.constant 2 : index
    %c0_1 = arith.constant 0 : index
    %1 = vector.load %arg1[%c2, %c0_1] : memref<8x24xf32, #tpu.memory_space<vmem>>, vector<6x24xf32>
    %c0_2 = arith.constant 0 : index
    %c0_3 = arith.constant 0 : index
    %2 = vector.load %arg2[%c0_2, %c0_3] : memref<6x24xf32, #tpu.memory_space<vmem>>, vector<6x24xf32>
    %c0_4 = arith.constant 0 : index
    %c0_5 = arith.constant 0 : index
    %3 = vector.load %arg3[%c0_4, %c0_5] : memref<6x24xf32, #tpu.memory_space<vmem>>, vector<6x24xf32>
    %c0_6 = arith.constant 0 : index
    %c0_7 = arith.constant 0 : index
    %4 = vector.load %arg4[%c0_6, %c0_7] : memref<2x24xf32, #tpu.memory_space<vmem>>, vector<1x24xf32>
    %c1 = arith.constant 1 : index
    %c0_8 = arith.constant 0 : index
    %5 = vector.load %arg4[%c1, %c0_8] : memref<2x24xf32, #tpu.memory_space<vmem>>, vector<1x24xf32>
    %c0_9 = arith.constant 0 : index
    %c0_10 = arith.constant 0 : index
    %6 = vector.load %arg0[%c0_9, %c0_10] : memref<16x2xf32, #tpu.memory_space<vmem>>, vector<16x2xf32>
    %cst = arith.constant dense<0.000000e+00> : vector<16x24xf32>
    %7 = tpu.matmul %6, %0, %cst {dimension_numbers = #tpu.dot_dimension_numbers<[1], [0], [0], [1], [0, 0, 1, 1], [], []>} : vector<16x2xf32>, vector<2x24xf32>, vector<16x24xf32> -> vector<16x24xf32>
    %8 = vector.broadcast %4 : vector<1x24xf32> to vector<16x24xf32>
    %9 = arith.addf %7, %8 : vector<16x24xf32>
    %c0_11 = arith.constant 0 : index
    %c0_12 = arith.constant 0 : index
    %10 = vector.load %arg7[%c0_11, %c0_12] : memref<16x24xf32, #tpu.memory_space<vmem>>, vector<16x24xf32>
    tpu.vector_store %arg7[%c0_11, %c0_12], %9 {strides = array<i32>} : memref<16x24xf32, #tpu.memory_space<vmem>>, vector<16x24xf32>,
    %cst_13 = arith.constant 0.000000e+00 : f32
    %11 = vector.broadcast %cst_13 : f32 to vector<2x6xf32>
    %cst_14 = arith.constant dense<0.000000e+00> : vector<2x24xf32>
    %12 = tpu.matmul %11, %3, %cst_14 {dimension_numbers = #tpu.dot_dimension_numbers<[1], [0], [0], [1], [0, 0, 1, 1], [], []>} : vector<2x6xf32>, vector<6x24xf32>, vector<2x24xf32> -> vector<2x24xf32>
    %13 = vector.broadcast %5 : vector<1x24xf32> to vector<2x24xf32>
    %14 = arith.addf %12, %13 : vector<2x24xf32>
    %c0_15 = arith.constant 0 : index
    %c0_16 = arith.constant 0 : index
    %15 = vector.load %arg7[%c0_15, %c0_16] : memref<16x24xf32, #tpu.memory_space<vmem>>, vector<2x24xf32>
    %cst_17 = arith.constant dense<0.000000e+00> : vector<2x24xf32>
    %16 = tpu.matmul %11, %1, %cst_17 {dimension_numbers = #tpu.dot_dimension_numbers<[1], [0], [0], [1], [0, 0, 1, 1], [], []>} : vector<2x6xf32>, vector<6x24xf32>, vector<2x24xf32> -> vector<2x24xf32>
    %17 = arith.addf %15, %16 : vector<2x24xf32>
    %18 = arith.negf %17 : vector<2x24xf32>
    %19 = math.exp %18 : vector<2x24xf32>
    %cst_18 = arith.constant 1.000000e+00 : f32
    %20 = vector.broadcast %cst_18 : f32 to vector<2x24xf32>
    %21 = arith.addf %20, %19 : vector<2x24xf32>
    %22 = arith.divf %20, %21 : vector<2x24xf32>
    %23 = math.tanh %17 : vector<2x24xf32>
    %24 = vector.extract_strided_slice %22 {offsets = [0, 0], sizes = [2, 6], strides = [1, 1]} : vector<2x24xf32> to vector<2x6xf32>
    %25 = vector.extract_strided_slice %22 {offsets = [0, 6], sizes = [2, 6], strides = [1, 1]} : vector<2x24xf32> to vector<2x6xf32>
    %26 = vector.extract_strided_slice %23 {offsets = [0, 12], sizes = [2, 6], strides = [1, 1]} : vector<2x24xf32> to vector<2x6xf32>
    %27 = vector.extract_strided_slice %22 {offsets = [0, 18], sizes = [2, 6], strides = [1, 1]} : vector<2x24xf32> to vector<2x6xf32>
    %28 = arith.mulf %25, %11 : vector<2x6xf32>
    %29 = arith.mulf %24, %26 : vector<2x6xf32>
    %30 = arith.addf %28, %29 : vector<2x6xf32>
    %31 = math.tanh %30 : vector<2x6xf32>
    %32 = arith.mulf %27, %31 : vector<2x6xf32>
    %cst_19 = arith.constant dense<0.000000e+00> : vector<2x24xf32>
    %33 = tpu.matmul %32, %2, %cst_19 {dimension_numbers = #tpu.dot_dimension_numbers<[1], [0], [0], [1], [0, 0, 1, 1], [], []>} : vector<2x6xf32>, vector<6x24xf32>, vector<2x24xf32> -> vector<2x24xf32>
    %34 = arith.addf %14, %33 : vector<2x24xf32>
    %35 = arith.negf %34 : vector<2x24xf32>
    %36 = math.exp %35 : vector<2x24xf32>
    %cst_20 = arith.constant 1.000000e+00 : f32
    %37 = vector.broadcast %cst_20 : f32 to vector<2x24xf32>
    %38 = arith.addf %37, %36 : vector<2x24xf32>
    %39 = arith.divf %37, %38 : vector<2x24xf32>
    %40 = math.tanh %34 : vector<2x24xf32>
    %41 = vector.extract_strided_slice %39 {offsets = [0, 0], sizes = [2, 6], strides = [1, 1]} : vector<2x24xf32> to vector<2x6xf32>
    %42 = vector.extract_strided_slice %39 {offsets = [0, 6], sizes = [2, 6], strides = [1, 1]} : vector<2x24xf32> to vector<2x6xf32>
    %43 = vector.extract_strided_slice %40 {offsets = [0, 12], sizes = [2, 6], strides = [1, 1]} : vector<2x24xf32> to vector<2x6xf32>
    %44 = vector.extract_strided_slice %39 {offsets = [0, 18], sizes = [2, 6], strides = [1, 1]} : vector<2x24xf32> to vector<2x6xf32>
    %45 = arith.mulf %42, %11 : vector<2x6xf32>
    %46 = arith.mulf %41, %43 : vector<2x6xf32>
    %47 = arith.addf %45, %46 : vector<2x6xf32>
    %48 = math.tanh %47 : vector<2x6xf32>
    %49 = arith.mulf %44, %48 : vector<2x6xf32>
    %c0_21 = arith.constant 0 : index
    %c0_22 = arith.constant 0 : index
    %50 = vector.load %arg8[%c0_21, %c0_22] : memref<16x6xf32, #tpu.memory_space<vmem>>, vector<2x6xf32>
    tpu.vector_store %arg8[%c0_21, %c0_22], %49 {strides = array<i32>} : memref<16x6xf32, #tpu.memory_space<vmem>>, vector<2x6xf32>,
    %cst_23 = arith.constant dense<0.000000e+00> : vector<2x24xf32>
    %51 = tpu.matmul %49, %3, %cst_23 {dimension_numbers = #tpu.dot_dimension_numbers<[1], [0], [0], [1], [0, 0, 1, 1], [], []>} : vector<2x6xf32>, vector<6x24xf32>, vector<2x24xf32> -> vector<2x24xf32>
    %52 = vector.broadcast %5 : vector<1x24xf32> to vector<2x24xf32>
    %53 = arith.addf %51, %52 : vector<2x24xf32>
    %c2_24 = arith.constant 2 : index
    %c0_25 = arith.constant 0 : index
    %54 = vector.load %arg7[%c2_24, %c0_25] : memref<16x24xf32, #tpu.memory_space<vmem>>, vector<2x24xf32>
    %cst_26 = arith.constant dense<0.000000e+00> : vector<2x24xf32>
    %55 = tpu.matmul %32, %1, %cst_26 {dimension_numbers = #tpu.dot_dimension_numbers<[1], [0], [0], [1], [0, 0, 1, 1], [], []>} : vector<2x6xf32>, vector<6x24xf32>, vector<2x24xf32> -> vector<2x24xf32>
    %56 = arith.addf %54, %55 : vector<2x24xf32>
    %57 = arith.negf %56 : vector<2x24xf32>
    %58 = math.exp %57 : vector<2x24xf32>
    %cst_27 = arith.constant 1.000000e+00 : f32
    %59 = vector.broadcast %cst_27 : f32 to vector<2x24xf32>
    %60 = arith.addf %59, %58 : vector<2x24xf32>
    %61 = arith.divf %59, %60 : vector<2x24xf32>
    %62 = math.tanh %56 : vector<2x24xf32>
    %63 = vector.extract_strided_slice %61 {offsets = [0, 0], sizes = [2, 6], strides = [1, 1]} : vector<2x24xf32> to vector<2x6xf32>
    %64 = vector.extract_strided_slice %61 {offsets = [0, 6], sizes = [2, 6], strides = [1, 1]} : vector<2x24xf32> to vector<2x6xf32>
    %65 = vector.extract_strided_slice %62 {offsets = [0, 12], sizes = [2, 6], strides = [1, 1]} : vector<2x24xf32> to vector<2x6xf32>
    %66 = vector.extract_strided_slice %61 {offsets = [0, 18], sizes = [2, 6], strides = [1, 1]} : vector<2x24xf32> to vector<2x6xf32>
    %67 = arith.mulf %64, %30 : vector<2x6xf32>
    %68 = arith.mulf %63, %65 : vector<2x6xf32>
    %69 = arith.addf %67, %68 : vector<2x6xf32>
    %70 = math.tanh %69 : vector<2x6xf32>
    %71 = arith.mulf %66, %70 : vector<2x6xf32>
    %cst_28 = arith.constant dense<0.000000e+00> : vector<2x24xf32>
    %72 = tpu.matmul %71, %2, %cst_28 {dimension_numbers = #tpu.dot_dimension_numbers<[1], [0], [0], [1], [0, 0, 1, 1], [], []>} : vector<2x6xf32>, vector<6x24xf32>, vector<2x24xf32> -> vector<2x24xf32>
    %73 = arith.addf %53, %72 : vector<2x24xf32>
    %74 = arith.negf %73 : vector<2x24xf32>
    %75 = math.exp %74 : vector<2x24xf32>
    %cst_29 = arith.constant 1.000000e+00 : f32
    %76 = vector.broadcast %cst_29 : f32 to vector<2x24xf32>
    %77 = arith.addf %76, %75 : vector<2x24xf32>
    %78 = arith.divf %76, %77 : vector<2x24xf32>
    %79 = math.tanh %73 : vector<2x24xf32>
    %80 = vector.extract_strided_slice %78 {offsets = [0, 0], sizes = [2, 6], strides = [1, 1]} : vector<2x24xf32> to vector<2x6xf32>
    %81 = vector.extract_strided_slice %78 {offsets = [0, 6], sizes = [2, 6], strides = [1, 1]} : vector<2x24xf32> to vector<2x6xf32>
    %82 = vector.extract_strided_slice %79 {offsets = [0, 12], sizes = [2, 6], strides = [1, 1]} : vector<2x24xf32> to vector<2x6xf32>
    %83 = vector.extract_strided_slice %78 {offsets = [0, 18], sizes = [2, 6], strides = [1, 1]} : vector<2x24xf32> to vector<2x6xf32>
    %84 = arith.mulf %81, %47 : vector<2x6xf32>
    %85 = arith.mulf %80, %82 : vector<2x6xf32>
    %86 = arith.addf %84, %85 : vector<2x6xf32>
    %87 = math.tanh %86 : vector<2x6xf32>
    %88 = arith.mulf %83, %87 : vector<2x6xf32>
    %c2_30 = arith.constant 2 : index
    %c0_31 = arith.constant 0 : index
    %89 = vector.load %arg8[%c2_30, %c0_31] : memref<16x6xf32, #tpu.memory_space<vmem>>, vector<2x6xf32>
    tpu.vector_store %arg8[%c2_30, %c0_31], %88 {strides = array<i32>} : memref<16x6xf32, #tpu.memory_space<vmem>>, vector<2x6xf32>,
    %cst_32 = arith.constant dense<0.000000e+00> : vector<2x24xf32>
    %90 = tpu.matmul %88, %3, %cst_32 {dimension_numbers = #tpu.dot_dimension_numbers<[1], [0], [0], [1], [0, 0, 1, 1], [], []>} : vector<2x6xf32>, vector<6x24xf32>, vector<2x24xf32> -> vector<2x24xf32>
    %91 = vector.broadcast %5 : vector<1x24xf32> to vector<2x24xf32>
    %92 = arith.addf %90, %91 : vector<2x24xf32>
    %c4 = arith.constant 4 : index
    %c0_33 = arith.constant 0 : index
    %93 = vector.load %arg7[%c4, %c0_33] : memref<16x24xf32, #tpu.memory_space<vmem>>, vector<2x24xf32>
    %cst_34 = arith.constant dense<0.000000e+00> : vector<2x24xf32>
    %94 = tpu.matmul %71, %1, %cst_34 {dimension_numbers = #tpu.dot_dimension_numbers<[1], [0], [0], [1], [0, 0, 1, 1], [], []>} : vector<2x6xf32>, vector<6x24xf32>, vector<2x24xf32> -> vector<2x24xf32>
    %95 = arith.addf %93, %94 : vector<2x24xf32>
    %96 = arith.negf %95 : vector<2x24xf32>
    %97 = math.exp %96 : vector<2x24xf32>
    %cst_35 = arith.constant 1.000000e+00 : f32
    %98 = vector.broadcast %cst_35 : f32 to vector<2x24xf32>
    %99 = arith.addf %98, %97 : vector<2x24xf32>
    %100 = arith.divf %98, %99 : vector<2x24xf32>
    %101 = math.tanh %95 : vector<2x24xf32>
    %102 = vector.extract_strided_slice %100 {offsets = [0, 0], sizes = [2, 6], strides = [1, 1]} : vector<2x24xf32> to vector<2x6xf32>
    %103 = vector.extract_strided_slice %100 {offsets = [0, 6], sizes = [2, 6], strides = [1, 1]} : vector<2x24xf32> to vector<2x6xf32>
    %104 = vector.extract_strided_slice %101 {offsets = [0, 12], sizes = [2, 6], strides = [1, 1]} : vector<2x24xf32> to vector<2x6xf32>
    %105 = vector.extract_strided_slice %100 {offsets = [0, 18], sizes = [2, 6], strides = [1, 1]} : vector<2x24xf32> to vector<2x6xf32>
    %106 = arith.mulf %103, %69 : vector<2x6xf32>
    %107 = arith.mulf %102, %104 : vector<2x6xf32>
    %108 = arith.addf %106, %107 : vector<2x6xf32>
    %109 = math.tanh %108 : vector<2x6xf32>
    %110 = arith.mulf %105, %109 : vector<2x6xf32>
    %cst_36 = arith.constant dense<0.000000e+00> : vector<2x24xf32>
    %111 = tpu.matmul %110, %2, %cst_36 {dimension_numbers = #tpu.dot_dimension_numbers<[1], [0], [0], [1], [0, 0, 1, 1], [], []>} : vector<2x6xf32>, vector<6x24xf32>, vector<2x24xf32> -> vector<2x24xf32>
    %112 = arith.addf %92, %111 : vector<2x24xf32>
    %113 = arith.negf %112 : vector<2x24xf32>
    %114 = math.exp %113 : vector<2x24xf32>
    %cst_37 = arith.constant 1.000000e+00 : f32
    %115 = vector.broadcast %cst_37 : f32 to vector<2x24xf32>
    %116 = arith.addf %115, %114 : vector<2x24xf32>
    %117 = arith.divf %115, %116 : vector<2x24xf32>
    %118 = math.tanh %112 : vector<2x24xf32>
    %119 = vector.extract_strided_slice %117 {offsets = [0, 0], sizes = [2, 6], strides = [1, 1]} : vector<2x24xf32> to vector<2x6xf32>
    %120 = vector.extract_strided_slice %117 {offsets = [0, 6], sizes = [2, 6], strides = [1, 1]} : vector<2x24xf32> to vector<2x6xf32>
    %121 = vector.extract_strided_slice %118 {offsets = [0, 12], sizes = [2, 6], strides = [1, 1]} : vector<2x24xf32> to vector<2x6xf32>
    %122 = vector.extract_strided_slice %117 {offsets = [0, 18], sizes = [2, 6], strides = [1, 1]} : vector<2x24xf32> to vector<2x6xf32>
    %123 = arith.mulf %120, %86 : vector<2x6xf32>
    %124 = arith.mulf %119, %121 : vector<2x6xf32>
    %125 = arith.addf %123, %124 : vector<2x6xf32>
    %126 = math.tanh %125 : vector<2x6xf32>
    %127 = arith.mulf %122, %126 : vector<2x6xf32>
    %c4_38 = arith.constant 4 : index
    %c0_39 = arith.constant 0 : index
    %128 = vector.load %arg8[%c4_38, %c0_39] : memref<16x6xf32, #tpu.memory_space<vmem>>, vector<2x6xf32>
    tpu.vector_store %arg8[%c4_38, %c0_39], %127 {strides = array<i32>} : memref<16x6xf32, #tpu.memory_space<vmem>>, vector<2x6xf32>,
    %cst_40 = arith.constant dense<0.000000e+00> : vector<2x24xf32>
    %129 = tpu.matmul %127, %3, %cst_40 {dimension_numbers = #tpu.dot_dimension_numbers<[1], [0], [0], [1], [0, 0, 1, 1], [], []>} : vector<2x6xf32>, vector<6x24xf32>, vector<2x24xf32> -> vector<2x24xf32>
    %130 = vector.broadcast %5 : vector<1x24xf32> to vector<2x24xf32>
    %131 = arith.addf %129, %130 : vector<2x24xf32>
    %c6 = arith.constant 6 : index
    %c0_41 = arith.constant 0 : index
    %132 = vector.load %arg7[%c6, %c0_41] : memref<16x24xf32, #tpu.memory_space<vmem>>, vector<2x24xf32>
    %cst_42 = arith.constant dense<0.000000e+00> : vector<2x24xf32>
    %133 = tpu.matmul %110, %1, %cst_42 {dimension_numbers = #tpu.dot_dimension_numbers<[1], [0], [0], [1], [0, 0, 1, 1], [], []>} : vector<2x6xf32>, vector<6x24xf32>, vector<2x24xf32> -> vector<2x24xf32>
    %134 = arith.addf %132, %133 : vector<2x24xf32>
    %135 = arith.negf %134 : vector<2x24xf32>
    %136 = math.exp %135 : vector<2x24xf32>
    %cst_43 = arith.constant 1.000000e+00 : f32
    %137 = vector.broadcast %cst_43 : f32 to vector<2x24xf32>
    %138 = arith.addf %137, %136 : vector<2x24xf32>
    %139 = arith.divf %137, %138 : vector<2x24xf32>
    %140 = math.tanh %134 : vector<2x24xf32>
    %141 = vector.extract_strided_slice %139 {offsets = [0, 0], sizes = [2, 6], strides = [1, 1]} : vector<2x24xf32> to vector<2x6xf32>
    %142 = vector.extract_strided_slice %139 {offsets = [0, 6], sizes = [2, 6], strides = [1, 1]} : vector<2x24xf32> to vector<2x6xf32>
    %143 = vector.extract_strided_slice %140 {offsets = [0, 12], sizes = [2, 6], strides = [1, 1]} : vector<2x24xf32> to vector<2x6xf32>
    %144 = vector.extract_strided_slice %139 {offsets = [0, 18], sizes = [2, 6], strides = [1, 1]} : vector<2x24xf32> to vector<2x6xf32>
    %145 = arith.mulf %142, %108 : vector<2x6xf32>
    %146 = arith.mulf %141, %143 : vector<2x6xf32>
    %147 = arith.addf %145, %146 : vector<2x6xf32>
    %148 = math.tanh %147 : vector<2x6xf32>
    %149 = arith.mulf %144, %148 : vector<2x6xf32>
    %cst_44 = arith.constant dense<0.000000e+00> : vector<2x24xf32>
    %150 = tpu.matmul %149, %2, %cst_44 {dimension_numbers = #tpu.dot_dimension_numbers<[1], [0], [0], [1], [0, 0, 1, 1], [], []>} : vector<2x6xf32>, vector<6x24xf32>, vector<2x24xf32> -> vector<2x24xf32>
    %151 = arith.addf %131, %150 : vector<2x24xf32>
    %152 = arith.negf %151 : vector<2x24xf32>
    %153 = math.exp %152 : vector<2x24xf32>
    %cst_45 = arith.constant 1.000000e+00 : f32
    %154 = vector.broadcast %cst_45 : f32 to vector<2x24xf32>
    %155 = arith.addf %154, %153 : vector<2x24xf32>
    %156 = arith.divf %154, %155 : vector<2x24xf32>
    %157 = math.tanh %151 : vector<2x24xf32>
    %158 = vector.extract_strided_slice %156 {offsets = [0, 0], sizes = [2, 6], strides = [1, 1]} : vector<2x24xf32> to vector<2x6xf32>
    %159 = vector.extract_strided_slice %156 {offsets = [0, 6], sizes = [2, 6], strides = [1, 1]} : vector<2x24xf32> to vector<2x6xf32>
    %160 = vector.extract_strided_slice %157 {offsets = [0, 12], sizes = [2, 6], strides = [1, 1]} : vector<2x24xf32> to vector<2x6xf32>
    %161 = vector.extract_strided_slice %156 {offsets = [0, 18], sizes = [2, 6], strides = [1, 1]} : vector<2x24xf32> to vector<2x6xf32>
    %162 = arith.mulf %159, %125 : vector<2x6xf32>
    %163 = arith.mulf %158, %160 : vector<2x6xf32>
    %164 = arith.addf %162, %163 : vector<2x6xf32>
    %165 = math.tanh %164 : vector<2x6xf32>
    %166 = arith.mulf %161, %165 : vector<2x6xf32>
    %c6_46 = arith.constant 6 : index
    %c0_47 = arith.constant 0 : index
    %167 = vector.load %arg8[%c6_46, %c0_47] : memref<16x6xf32, #tpu.memory_space<vmem>>, vector<2x6xf32>
    tpu.vector_store %arg8[%c6_46, %c0_47], %166 {strides = array<i32>} : memref<16x6xf32, #tpu.memory_space<vmem>>, vector<2x6xf32>,
    %cst_48 = arith.constant dense<0.000000e+00> : vector<2x24xf32>
    %168 = tpu.matmul %166, %3, %cst_48 {dimension_numbers = #tpu.dot_dimension_numbers<[1], [0], [0], [1], [0, 0, 1, 1], [], []>} : vector<2x6xf32>, vector<6x24xf32>, vector<2x24xf32> -> vector<2x24xf32>
    %169 = vector.broadcast %5 : vector<1x24xf32> to vector<2x24xf32>
    %170 = arith.addf %168, %169 : vector<2x24xf32>
    %c8 = arith.constant 8 : index
    %c0_49 = arith.constant 0 : index
    %171 = vector.load %arg7[%c8, %c0_49] : memref<16x24xf32, #tpu.memory_space<vmem>>, vector<2x24xf32>
    %cst_50 = arith.constant dense<0.000000e+00> : vector<2x24xf32>
    %172 = tpu.matmul %149, %1, %cst_50 {dimension_numbers = #tpu.dot_dimension_numbers<[1], [0], [0], [1], [0, 0, 1, 1], [], []>} : vector<2x6xf32>, vector<6x24xf32>, vector<2x24xf32> -> vector<2x24xf32>
    %173 = arith.addf %171, %172 : vector<2x24xf32>
    %174 = arith.negf %173 : vector<2x24xf32>
    %175 = math.exp %174 : vector<2x24xf32>
    %cst_51 = arith.constant 1.000000e+00 : f32
    %176 = vector.broadcast %cst_51 : f32 to vector<2x24xf32>
    %177 = arith.addf %176, %175 : vector<2x24xf32>
    %178 = arith.divf %176, %177 : vector<2x24xf32>
    %179 = math.tanh %173 : vector<2x24xf32>
    %180 = vector.extract_strided_slice %178 {offsets = [0, 0], sizes = [2, 6], strides = [1, 1]} : vector<2x24xf32> to vector<2x6xf32>
    %181 = vector.extract_strided_slice %178 {offsets = [0, 6], sizes = [2, 6], strides = [1, 1]} : vector<2x24xf32> to vector<2x6xf32>
    %182 = vector.extract_strided_slice %179 {offsets = [0, 12], sizes = [2, 6], strides = [1, 1]} : vector<2x24xf32> to vector<2x6xf32>
    %183 = vector.extract_strided_slice %178 {offsets = [0, 18], sizes = [2, 6], strides = [1, 1]} : vector<2x24xf32> to vector<2x6xf32>
    %184 = arith.mulf %181, %147 : vector<2x6xf32>
    %185 = arith.mulf %180, %182 : vector<2x6xf32>
    %186 = arith.addf %184, %185 : vector<2x6xf32>
    %187 = math.tanh %186 : vector<2x6xf32>
    %188 = arith.mulf %183, %187 : vector<2x6xf32>
    %cst_52 = arith.constant dense<0.000000e+00> : vector<2x24xf32>
    %189 = tpu.matmul %188, %2, %cst_52 {dimension_numbers = #tpu.dot_dimension_numbers<[1], [0], [0], [1], [0, 0, 1, 1], [], []>} : vector<2x6xf32>, vector<6x24xf32>, vector<2x24xf32> -> vector<2x24xf32>
    %190 = arith.addf %170, %189 : vector<2x24xf32>
    %191 = arith.negf %190 : vector<2x24xf32>
    %192 = math.exp %191 : vector<2x24xf32>
    %cst_53 = arith.constant 1.000000e+00 : f32
    %193 = vector.broadcast %cst_53 : f32 to vector<2x24xf32>
    %194 = arith.addf %193, %192 : vector<2x24xf32>
    %195 = arith.divf %193, %194 : vector<2x24xf32>
    %196 = math.tanh %190 : vector<2x24xf32>
    %197 = vector.extract_strided_slice %195 {offsets = [0, 0], sizes = [2, 6], strides = [1, 1]} : vector<2x24xf32> to vector<2x6xf32>
    %198 = vector.extract_strided_slice %195 {offsets = [0, 6], sizes = [2, 6], strides = [1, 1]} : vector<2x24xf32> to vector<2x6xf32>
    %199 = vector.extract_strided_slice %196 {offsets = [0, 12], sizes = [2, 6], strides = [1, 1]} : vector<2x24xf32> to vector<2x6xf32>
    %200 = vector.extract_strided_slice %195 {offsets = [0, 18], sizes = [2, 6], strides = [1, 1]} : vector<2x24xf32> to vector<2x6xf32>
    %201 = arith.mulf %198, %164 : vector<2x6xf32>
    %202 = arith.mulf %197, %199 : vector<2x6xf32>
    %203 = arith.addf %201, %202 : vector<2x6xf32>
    %204 = math.tanh %203 : vector<2x6xf32>
    %205 = arith.mulf %200, %204 : vector<2x6xf32>
    %c8_54 = arith.constant 8 : index
    %c0_55 = arith.constant 0 : index
    %206 = vector.load %arg8[%c8_54, %c0_55] : memref<16x6xf32, #tpu.memory_space<vmem>>, vector<2x6xf32>
    tpu.vector_store %arg8[%c8_54, %c0_55], %205 {strides = array<i32>} : memref<16x6xf32, #tpu.memory_space<vmem>>, vector<2x6xf32>,
    %cst_56 = arith.constant dense<0.000000e+00> : vector<2x24xf32>
    %207 = tpu.matmul %205, %3, %cst_56 {dimension_numbers = #tpu.dot_dimension_numbers<[1], [0], [0], [1], [0, 0, 1, 1], [], []>} : vector<2x6xf32>, vector<6x24xf32>, vector<2x24xf32> -> vector<2x24xf32>
    %208 = vector.broadcast %5 : vector<1x24xf32> to vector<2x24xf32>
    %209 = arith.addf %207, %208 : vector<2x24xf32>
    %c10 = arith.constant 10 : index
    %c0_57 = arith.constant 0 : index
    %210 = vector.load %arg7[%c10, %c0_57] : memref<16x24xf32, #tpu.memory_space<vmem>>, vector<2x24xf32>
    %cst_58 = arith.constant dense<0.000000e+00> : vector<2x24xf32>
    %211 = tpu.matmul %188, %1, %cst_58 {dimension_numbers = #tpu.dot_dimension_numbers<[1], [0], [0], [1], [0, 0, 1, 1], [], []>} : vector<2x6xf32>, vector<6x24xf32>, vector<2x24xf32> -> vector<2x24xf32>
    %212 = arith.addf %210, %211 : vector<2x24xf32>
    %213 = arith.negf %212 : vector<2x24xf32>
    %214 = math.exp %213 : vector<2x24xf32>
    %cst_59 = arith.constant 1.000000e+00 : f32
    %215 = vector.broadcast %cst_59 : f32 to vector<2x24xf32>
    %216 = arith.addf %215, %214 : vector<2x24xf32>
    %217 = arith.divf %215, %216 : vector<2x24xf32>
    %218 = math.tanh %212 : vector<2x24xf32>
    %219 = vector.extract_strided_slice %217 {offsets = [0, 0], sizes = [2, 6], strides = [1, 1]} : vector<2x24xf32> to vector<2x6xf32>
    %220 = vector.extract_strided_slice %217 {offsets = [0, 6], sizes = [2, 6], strides = [1, 1]} : vector<2x24xf32> to vector<2x6xf32>
    %221 = vector.extract_strided_slice %218 {offsets = [0, 12], sizes = [2, 6], strides = [1, 1]} : vector<2x24xf32> to vector<2x6xf32>
    %222 = vector.extract_strided_slice %217 {offsets = [0, 18], sizes = [2, 6], strides = [1, 1]} : vector<2x24xf32> to vector<2x6xf32>
    %223 = arith.mulf %220, %186 : vector<2x6xf32>
    %224 = arith.mulf %219, %221 : vector<2x6xf32>
    %225 = arith.addf %223, %224 : vector<2x6xf32>
    %226 = math.tanh %225 : vector<2x6xf32>
    %227 = arith.mulf %222, %226 : vector<2x6xf32>
    %cst_60 = arith.constant dense<0.000000e+00> : vector<2x24xf32>
    %228 = tpu.matmul %227, %2, %cst_60 {dimension_numbers = #tpu.dot_dimension_numbers<[1], [0], [0], [1], [0, 0, 1, 1], [], []>} : vector<2x6xf32>, vector<6x24xf32>, vector<2x24xf32> -> vector<2x24xf32>
    %229 = arith.addf %209, %228 : vector<2x24xf32>
    %230 = arith.negf %229 : vector<2x24xf32>
    %231 = math.exp %230 : vector<2x24xf32>
    %cst_61 = arith.constant 1.000000e+00 : f32
    %232 = vector.broadcast %cst_61 : f32 to vector<2x24xf32>
    %233 = arith.addf %232, %231 : vector<2x24xf32>
    %234 = arith.divf %232, %233 : vector<2x24xf32>
    %235 = math.tanh %229 : vector<2x24xf32>
    %236 = vector.extract_strided_slice %234 {offsets = [0, 0], sizes = [2, 6], strides = [1, 1]} : vector<2x24xf32> to vector<2x6xf32>
    %237 = vector.extract_strided_slice %234 {offsets = [0, 6], sizes = [2, 6], strides = [1, 1]} : vector<2x24xf32> to vector<2x6xf32>
    %238 = vector.extract_strided_slice %235 {offsets = [0, 12], sizes = [2, 6], strides = [1, 1]} : vector<2x24xf32> to vector<2x6xf32>
    %239 = vector.extract_strided_slice %234 {offsets = [0, 18], sizes = [2, 6], strides = [1, 1]} : vector<2x24xf32> to vector<2x6xf32>
    %240 = arith.mulf %237, %203 : vector<2x6xf32>
    %241 = arith.mulf %236, %238 : vector<2x6xf32>
    %242 = arith.addf %240, %241 : vector<2x6xf32>
    %243 = math.tanh %242 : vector<2x6xf32>
    %244 = arith.mulf %239, %243 : vector<2x6xf32>
    %c10_62 = arith.constant 10 : index
    %c0_63 = arith.constant 0 : index
    %245 = vector.load %arg8[%c10_62, %c0_63] : memref<16x6xf32, #tpu.memory_space<vmem>>, vector<2x6xf32>
    tpu.vector_store %arg8[%c10_62, %c0_63], %244 {strides = array<i32>} : memref<16x6xf32, #tpu.memory_space<vmem>>, vector<2x6xf32>,
    %cst_64 = arith.constant dense<0.000000e+00> : vector<2x24xf32>
    %246 = tpu.matmul %244, %3, %cst_64 {dimension_numbers = #tpu.dot_dimension_numbers<[1], [0], [0], [1], [0, 0, 1, 1], [], []>} : vector<2x6xf32>, vector<6x24xf32>, vector<2x24xf32> -> vector<2x24xf32>
    %247 = vector.broadcast %5 : vector<1x24xf32> to vector<2x24xf32>
    %248 = arith.addf %246, %247 : vector<2x24xf32>
    %c12 = arith.constant 12 : index
    %c0_65 = arith.constant 0 : index
    %249 = vector.load %arg7[%c12, %c0_65] : memref<16x24xf32, #tpu.memory_space<vmem>>, vector<2x24xf32>
    %cst_66 = arith.constant dense<0.000000e+00> : vector<2x24xf32>
    %250 = tpu.matmul %227, %1, %cst_66 {dimension_numbers = #tpu.dot_dimension_numbers<[1], [0], [0], [1], [0, 0, 1, 1], [], []>} : vector<2x6xf32>, vector<6x24xf32>, vector<2x24xf32> -> vector<2x24xf32>
    %251 = arith.addf %249, %250 : vector<2x24xf32>
    %252 = arith.negf %251 : vector<2x24xf32>
    %253 = math.exp %252 : vector<2x24xf32>
    %cst_67 = arith.constant 1.000000e+00 : f32
    %254 = vector.broadcast %cst_67 : f32 to vector<2x24xf32>
    %255 = arith.addf %254, %253 : vector<2x24xf32>
    %256 = arith.divf %254, %255 : vector<2x24xf32>
    %257 = math.tanh %251 : vector<2x24xf32>
    %258 = vector.extract_strided_slice %256 {offsets = [0, 0], sizes = [2, 6], strides = [1, 1]} : vector<2x24xf32> to vector<2x6xf32>
    %259 = vector.extract_strided_slice %256 {offsets = [0, 6], sizes = [2, 6], strides = [1, 1]} : vector<2x24xf32> to vector<2x6xf32>
    %260 = vector.extract_strided_slice %257 {offsets = [0, 12], sizes = [2, 6], strides = [1, 1]} : vector<2x24xf32> to vector<2x6xf32>
    %261 = vector.extract_strided_slice %256 {offsets = [0, 18], sizes = [2, 6], strides = [1, 1]} : vector<2x24xf32> to vector<2x6xf32>
    %262 = arith.mulf %259, %225 : vector<2x6xf32>
    %263 = arith.mulf %258, %260 : vector<2x6xf32>
    %264 = arith.addf %262, %263 : vector<2x6xf32>
    %265 = math.tanh %264 : vector<2x6xf32>
    %266 = arith.mulf %261, %265 : vector<2x6xf32>
    %cst_68 = arith.constant dense<0.000000e+00> : vector<2x24xf32>
    %267 = tpu.matmul %266, %2, %cst_68 {dimension_numbers = #tpu.dot_dimension_numbers<[1], [0], [0], [1], [0, 0, 1, 1], [], []>} : vector<2x6xf32>, vector<6x24xf32>, vector<2x24xf32> -> vector<2x24xf32>
    %268 = arith.addf %248, %267 : vector<2x24xf32>
    %269 = arith.negf %268 : vector<2x24xf32>
    %270 = math.exp %269 : vector<2x24xf32>
    %cst_69 = arith.constant 1.000000e+00 : f32
    %271 = vector.broadcast %cst_69 : f32 to vector<2x24xf32>
    %272 = arith.addf %271, %270 : vector<2x24xf32>
    %273 = arith.divf %271, %272 : vector<2x24xf32>
    %274 = math.tanh %268 : vector<2x24xf32>
    %275 = vector.extract_strided_slice %273 {offsets = [0, 0], sizes = [2, 6], strides = [1, 1]} : vector<2x24xf32> to vector<2x6xf32>
    %276 = vector.extract_strided_slice %273 {offsets = [0, 6], sizes = [2, 6], strides = [1, 1]} : vector<2x24xf32> to vector<2x6xf32>
    %277 = vector.extract_strided_slice %274 {offsets = [0, 12], sizes = [2, 6], strides = [1, 1]} : vector<2x24xf32> to vector<2x6xf32>
    %278 = vector.extract_strided_slice %273 {offsets = [0, 18], sizes = [2, 6], strides = [1, 1]} : vector<2x24xf32> to vector<2x6xf32>
    %279 = arith.mulf %276, %242 : vector<2x6xf32>
    %280 = arith.mulf %275, %277 : vector<2x6xf32>
    %281 = arith.addf %279, %280 : vector<2x6xf32>
    %282 = math.tanh %281 : vector<2x6xf32>
    %283 = arith.mulf %278, %282 : vector<2x6xf32>
    %c12_70 = arith.constant 12 : index
    %c0_71 = arith.constant 0 : index
    %284 = vector.load %arg8[%c12_70, %c0_71] : memref<16x6xf32, #tpu.memory_space<vmem>>, vector<2x6xf32>
    tpu.vector_store %arg8[%c12_70, %c0_71], %283 {strides = array<i32>} : memref<16x6xf32, #tpu.memory_space<vmem>>, vector<2x6xf32>,
    %cst_72 = arith.constant dense<0.000000e+00> : vector<2x24xf32>
    %285 = tpu.matmul %283, %3, %cst_72 {dimension_numbers = #tpu.dot_dimension_numbers<[1], [0], [0], [1], [0, 0, 1, 1], [], []>} : vector<2x6xf32>, vector<6x24xf32>, vector<2x24xf32> -> vector<2x24xf32>
    %286 = vector.broadcast %5 : vector<1x24xf32> to vector<2x24xf32>
    %287 = arith.addf %285, %286 : vector<2x24xf32>
    %c14 = arith.constant 14 : index
    %c0_73 = arith.constant 0 : index
    %288 = vector.load %arg7[%c14, %c0_73] : memref<16x24xf32, #tpu.memory_space<vmem>>, vector<2x24xf32>
    %cst_74 = arith.constant dense<0.000000e+00> : vector<2x24xf32>
    %289 = tpu.matmul %266, %1, %cst_74 {dimension_numbers = #tpu.dot_dimension_numbers<[1], [0], [0], [1], [0, 0, 1, 1], [], []>} : vector<2x6xf32>, vector<6x24xf32>, vector<2x24xf32> -> vector<2x24xf32>
    %290 = arith.addf %288, %289 : vector<2x24xf32>
    %291 = arith.negf %290 : vector<2x24xf32>
    %292 = math.exp %291 : vector<2x24xf32>
    %cst_75 = arith.constant 1.000000e+00 : f32
    %293 = vector.broadcast %cst_75 : f32 to vector<2x24xf32>
    %294 = arith.addf %293, %292 : vector<2x24xf32>
    %295 = arith.divf %293, %294 : vector<2x24xf32>
    %296 = math.tanh %290 : vector<2x24xf32>
    %297 = vector.extract_strided_slice %295 {offsets = [0, 0], sizes = [2, 6], strides = [1, 1]} : vector<2x24xf32> to vector<2x6xf32>
    %298 = vector.extract_strided_slice %295 {offsets = [0, 6], sizes = [2, 6], strides = [1, 1]} : vector<2x24xf32> to vector<2x6xf32>
    %299 = vector.extract_strided_slice %296 {offsets = [0, 12], sizes = [2, 6], strides = [1, 1]} : vector<2x24xf32> to vector<2x6xf32>
    %300 = vector.extract_strided_slice %295 {offsets = [0, 18], sizes = [2, 6], strides = [1, 1]} : vector<2x24xf32> to vector<2x6xf32>
    %301 = arith.mulf %298, %264 : vector<2x6xf32>
    %302 = arith.mulf %297, %299 : vector<2x6xf32>
    %303 = arith.addf %301, %302 : vector<2x6xf32>
    %304 = math.tanh %303 : vector<2x6xf32>
    %305 = arith.mulf %300, %304 : vector<2x6xf32>
    %cst_76 = arith.constant dense<0.000000e+00> : vector<2x24xf32>
    %306 = tpu.matmul %305, %2, %cst_76 {dimension_numbers = #tpu.dot_dimension_numbers<[1], [0], [0], [1], [0, 0, 1, 1], [], []>} : vector<2x6xf32>, vector<6x24xf32>, vector<2x24xf32> -> vector<2x24xf32>
    %307 = arith.addf %287, %306 : vector<2x24xf32>
    %308 = arith.negf %307 : vector<2x24xf32>
    %309 = math.exp %308 : vector<2x24xf32>
    %cst_77 = arith.constant 1.000000e+00 : f32
    %310 = vector.broadcast %cst_77 : f32 to vector<2x24xf32>
    %311 = arith.addf %310, %309 : vector<2x24xf32>
    %312 = arith.divf %310, %311 : vector<2x24xf32>
    %313 = math.tanh %307 : vector<2x24xf32>
    %314 = vector.extract_strided_slice %312 {offsets = [0, 0], sizes = [2, 6], strides = [1, 1]} : vector<2x24xf32> to vector<2x6xf32>
    %315 = vector.extract_strided_slice %312 {offsets = [0, 6], sizes = [2, 6], strides = [1, 1]} : vector<2x24xf32> to vector<2x6xf32>
    %316 = vector.extract_strided_slice %313 {offsets = [0, 12], sizes = [2, 6], strides = [1, 1]} : vector<2x24xf32> to vector<2x6xf32>
    %317 = vector.extract_strided_slice %312 {offsets = [0, 18], sizes = [2, 6], strides = [1, 1]} : vector<2x24xf32> to vector<2x6xf32>
    %318 = arith.mulf %315, %281 : vector<2x6xf32>
    %319 = arith.mulf %314, %316 : vector<2x6xf32>
    %320 = arith.addf %318, %319 : vector<2x6xf32>
    %321 = math.tanh %320 : vector<2x6xf32>
    %322 = arith.mulf %317, %321 : vector<2x6xf32>
    %c14_78 = arith.constant 14 : index
    %c0_79 = arith.constant 0 : index
    %323 = vector.load %arg8[%c14_78, %c0_79] : memref<16x6xf32, #tpu.memory_space<vmem>>, vector<2x6xf32>
    tpu.vector_store %arg8[%c14_78, %c0_79], %322 {strides = array<i32>} : memref<16x6xf32, #tpu.memory_space<vmem>>, vector<2x6xf32>,
    %c0_80 = arith.constant 0 : index
    %c0_81 = arith.constant 0 : index
    %324 = vector.load %arg5[%c0_80, %c0_81] : memref<7x1xf32, #tpu.memory_space<vmem>>, vector<6x1xf32>
    %c6_82 = arith.constant 6 : index
    %c0_83 = arith.constant 0 : index
    %325 = vector.load %arg5[%c6_82, %c0_83] : memref<7x1xf32, #tpu.memory_space<vmem>>, vector<1x1xf32>
    %c0_84 = arith.constant 0 : index
    %c0_85 = arith.constant 0 : index
    %326 = vector.load %arg8[%c0_84, %c0_85] : memref<16x6xf32, #tpu.memory_space<vmem>>, vector<16x6xf32>
    %cst_86 = arith.constant dense<0.000000e+00> : vector<16x1xf32>
    %327 = tpu.matmul %326, %324, %cst_86 {dimension_numbers = #tpu.dot_dimension_numbers<[1], [0], [0], [1], [0, 0, 1, 1], [], []>} : vector<16x6xf32>, vector<6x1xf32>, vector<16x1xf32> -> vector<16x1xf32>
    %328 = vector.broadcast %325 : vector<1x1xf32> to vector<16x1xf32>
    %329 = arith.addf %327, %328 : vector<16x1xf32>
    %c0_87 = arith.constant 0 : index
    %c0_88 = arith.constant 0 : index
    %330 = vector.load %arg6[%c0_87, %c0_88] : memref<16x1xf32, #tpu.memory_space<vmem>>, vector<16x1xf32>
    tpu.vector_store %arg6[%c0_87, %c0_88], %329 {strides = array<i32>} : memref<16x1xf32, #tpu.memory_space<vmem>>, vector<16x1xf32>,
    return
  }
}

</mosaic_0001>

<llo_original>
// kernel: tpu_custom_call.1
$region0: #{tpu_custom_call.1}
  #allocation0 [shape = 'u32[]', space=smem, size = 0x4, offset = 0x4, fixed_abs, tag = 'smem constant byte address 0x4 - core index']
  #allocation1 [shape = 'u32[144,128]{1,0:T(1,128)}', space=vmem, size = 0x12000, scoped, tag = 'internal scratch']
  #allocation2 [shape = 'f32[16,24]{1,0:T(8,128)}', space=vmem, size = 0x2000, scoped, tag = 'scratch operand']
  #allocation3 [shape = 'f32[16,6]{1,0:T(8,128)}', space=vmem, size = 0x2000, scoped, tag = 'scratch operand']
  %s0 = inlined_call_operand.vmem [shape: f32[16,2], index: 0, kind: input, shape index: {}]
  %s1 = inlined_call_operand.vmem [shape: f32[8,24], index: 1, kind: input, shape index: {}]
  %s2 = inlined_call_operand.vmem [shape: f32[6,24], index: 2, kind: input, shape index: {}]
  %s3 = inlined_call_operand.vmem [shape: f32[6,24], index: 3, kind: input, shape index: {}]
  %s4 = inlined_call_operand.vmem [shape: f32[2,24], index: 4, kind: input, shape index: {}]
  %s5 = inlined_call_operand.vmem [shape: f32[7,1], index: 5, kind: input, shape index: {}]
  %s6 = inlined_call_operand.vmem [shape: f32[16,1], index: 6, kind: output, shape index: {}]
  %s7 = sld [smem:[#allocation0]]
  $region34: #{tpu_custom_call.1} parent=0
    _
  %s9 = ssub.s32 1, %s7
  %s10 = scalar_select 0, %s9, %s7
  // Predicated region
  $region2: #{tpu_custom_call.1} parent=0 // pred_check
    _
  $region3: #{tpu_custom_call.1} parent=0 // pred_check_branch
    %12 = sbr.rel (0) target = $region5
  $region4: #{tpu_custom_call.1} parent=0 // pred_region
    _
  $region5: #{tpu_custom_call.1} parent=0 // pred_fallthru
    _
  // Predicated region
  $region6: #{tpu_custom_call.1} parent=0 // pred_check
    _
  $region7: #{tpu_custom_call.1} parent=0 // pred_check_branch
    %14 = sbr.rel (0) target = $region9
  $region8: #{tpu_custom_call.1} parent=0 // pred_region
    _
  $region9: #{tpu_custom_call.1} parent=0 // pred_fallthru
    _
  // Predicated region
  $region10: #{tpu_custom_call.1} parent=0 // pred_check
    _
  $region11: #{tpu_custom_call.1} parent=0 // pred_check_branch
    %16 = sbr.rel (0) target = $region13
  $region12: #{tpu_custom_call.1} parent=0 // pred_region
    _
  $region13: #{tpu_custom_call.1} parent=0 // pred_fallthru
    _
  // Predicated region
  $region14: #{tpu_custom_call.1} parent=0 // pred_check
    _
  $region15: #{tpu_custom_call.1} parent=0 // pred_check_branch
    %18 = sbr.rel (0) target = $region17
  $region16: #{tpu_custom_call.1} parent=0 // pred_region
    _
  $region17: #{tpu_custom_call.1} parent=0 // pred_fallthru
    _
  // Predicated region
  $region18: #{tpu_custom_call.1} parent=0 // pred_check
    _
  $region19: #{tpu_custom_call.1} parent=0 // pred_check_branch
    %20 = sbr.rel (0) target = $region21
  $region20: #{tpu_custom_call.1} parent=0 // pred_region
    _
  $region21: #{tpu_custom_call.1} parent=0 // pred_fallthru
    _
  // Predicated region
  $region22: #{tpu_custom_call.1} parent=0 // pred_check
    _
  $region23: #{tpu_custom_call.1} parent=0 // pred_check_branch
    %22 = sbr.rel (0) target = $region25
  $region24: #{tpu_custom_call.1} parent=0 // pred_region
    _
  $region25: #{tpu_custom_call.1} parent=0 // pred_fallthru
    _
  %v23 = vld [vmem:[%s1] sm:$0x3]
  %v24 = vld [vmem:[%s1 + $0x2] sm:$0x3f]
  %v25 = vld [vmem:[%s2] sm:$0x3f]
  %v26 = vld [vmem:[%s3] sm:$0x3f]
  %v27 = vld [vmem:[%s4] sm:$0x1]
  %v28 = vld [vmem:[%s4 + $0x1] sm:$0x1]
  %v29 = vld [vmem:[%s0] sm:$0xff]
  %v30 = vld [vmem:[%s0 + $0x8] sm:$0xff]
  %v31 = vlaneseq
  %v32 = vshrl.u32 %v31, 7
  %v33 = vsub.s32 0, %v32
  %v34 = vrot.slane %v27, %v33
  %vm35 = vcmask 15360
  %v37 = vsel %vm35, %v29, 0
  %v40 = vsel %vm35, %v30, 0
  %vm42 = vcmask 1041408
  %v44 = vsel %vm42, %v23, 0
  %46 = vmatprep.subr.mxu0 0.0
  %47 = vmatpush1.msra.mxu0 %v44
  %48 = vmatprep.subr.mxu0 0.0
  %49 = vmatpush1.msra.mxu0 0.0
  %50 = vmatprep.subr.mxu0 0.0
  %51 = vmatpush1.msra.mxu0 0.0
  %52 = vmatprep.subr.mxu0 0.0
  %53 = vmatpush1.msra.mxu0 0.0
  %54 = vmatprep.subr.mxu0 0.0
  %55 = vmatpush1.msra.mxu0 0.0
  %56 = vmatprep.subr.mxu0 0.0
  %57 = vmatpush1.msra.mxu0 0.0
  %58 = vmatprep.subr.mxu0 0.0
  %59 = vmatpush1.msra.mxu0 0.0
  %60 = vmatprep.subr.mxu0 0.0
  %61 = vmatpush1.msra.mxu0 0.0
  %62 = vmatprep.subr.mxu0 0.0
  %63 = vmatpush1.msra.mxu0 0.0
  %64 = vmatprep.subr.mxu0 0.0
  %65 = vmatpush1.msra.mxu0 0.0
  %66 = vmatprep.subr.mxu0 0.0
  %67 = vmatpush1.msra.mxu0 0.0
  %68 = vmatprep.subr.mxu0 0.0
  %69 = vmatpush1.msra.mxu0 0.0
  %70 = vmatprep.subr.mxu0 0.0
  %71 = vmatpush1.msra.mxu0 0.0
  %72 = vmatprep.subr.mxu0 0.0
  %73 = vmatpush1.msra.mxu0 0.0
  %74 = vmatprep.subr.mxu0 0.0
  %75 = vmatpush1.msra.mxu0 0.0
  %76 = vmatprep.subr.mxu0 0.0
  %77 = vmatpush1.msra.mxu0 0.0
  %78 = vmatprep.subr.mxu0 0.0
  %79 = vmatpush1.msra.mxu0 0.0
  %80 = vmatprep.subr.mxu0 0.0
  %81 = vmatpush1.msra.mxu0 0.0
  %82 = vmatprep.subr.mxu0 0.0
  %83 = vmatpush1.msra.mxu0 0.0
  %84 = vmatprep.subr.mxu0 0.0
  %85 = vmatpush1.msra.mxu0 0.0
  %86 = vmatprep.subr.mxu0 0.0
  %87 = vmatpush1.msra.mxu0 0.0
  %88 = vmatprep.subr.mxu0 0.0
  %89 = vmatpush1.msra.mxu0 0.0
  %90 = vmatprep.subr.mxu0 0.0
  %91 = vmatpush1.msra.mxu0 0.0
  %92 = vmatprep.subr.mxu0 0.0
  %93 = vmatpush1.msra.mxu0 0.0
  %94 = vmatprep.subr.mxu0 0.0
  %95 = vmatpush1.msra.mxu0 0.0
  %96 = vmatprep.subr.mxu0 0.0
  %97 = vmatpush1.msra.mxu0 0.0
  %98 = vmatprep.subr.mxu0 0.0
  %99 = vmatpush1.msra.mxu0 0.0
  %100 = vmatprep.subr.mxu0 0.0
  %101 = vmatpush1.msra.mxu0 0.0
  %102 = vmatprep.subr.mxu0 0.0
  %103 = vmatpush1.msra.mxu0 0.0
  %104 = vmatprep.subr.mxu0 0.0
  %105 = vmatpush1.msra.mxu0 0.0
  %106 = vmatprep.subr.mxu0 0.0
  %107 = vmatpush1.msra.mxu0 0.0
  %108 = vmatprep.subr.mxu0 0.0
  %109 = vmatpush1.msra.mxu0 0.0
  %110 = vmatprep.mubr.f32.mxu0 0.0
  %111 = vmatmul.mubr.f32.gmra.mrb[0].mxu0 %v37
  %v112 = vpop.f32.mrb[0].mxu0
  %v113 = vadd.f32 %v34, %v112
  %v114 = vpop.f32.mrb[0].mxu0
  %115 = vmatprep.mubr.f32.mxu0 0.0
  %116 = vmatmul.mubr.f32.gmra.mrb[0].mxu0 %v40
  %v117 = vpop.f32.mrb[0].mxu0
  %v118 = vadd.f32 %v34, %v117
  %v119 = vpop.f32.mrb[0].mxu0
  %120 = vdwg.mxu0
  %vm121 = vcmask 195584
  %122 = vst.msk [vmem:[#allocation2] sm:$0xff] %vm121, %v113
  %123 = vst.msk [vmem:[#allocation2 + $0x8] sm:$0xff] %vm121, %v118
  %v124 = vlaneseq
  %v125 = vshrl.u32 %v124, 7
  %v126 = vsub.s32 0, %v125
  %v127 = vrot.slane %v28, %v126
  %vm128 = vcmask 48128
  %v130 = vsel %vm128, 0.0, 0
  %vm132 = vcmask 1045504
  %v134 = vsel %vm132, %v26, 0
  %136 = vmatprep.subr.mxu0 0.0
  %137 = vmatpush1.msra.mxu0 %v134
  %138 = vmatprep.subr.mxu0 0.0
  %139 = vmatpush1.msra.mxu0 0.0
  %140 = vmatprep.subr.mxu0 0.0
  %141 = vmatpush1.msra.mxu0 0.0
  %142 = vmatprep.subr.mxu0 0.0
  %143 = vmatpush1.msra.mxu0 0.0
  %144 = vmatprep.subr.mxu0 0.0
  %145 = vmatpush1.msra.mxu0 0.0
  %146 = vmatprep.subr.mxu0 0.0
  %147 = vmatpush1.msra.mxu0 0.0
  %148 = vmatprep.subr.mxu0 0.0
  %149 = vmatpush1.msra.mxu0 0.0
  %150 = vmatprep.subr.mxu0 0.0
  %151 = vmatpush1.msra.mxu0 0.0
  %152 = vmatprep.subr.mxu0 0.0
  %153 = vmatpush1.msra.mxu0 0.0
  %154 = vmatprep.subr.mxu0 0.0
  %155 = vmatpush1.msra.mxu0 0.0
  %156 = vmatprep.subr.mxu0 0.0
  %157 = vmatpush1.msra.mxu0 0.0
  %158 = vmatprep.subr.mxu0 0.0
  %159 = vmatpush1.msra.mxu0 0.0
  %160 = vmatprep.subr.mxu0 0.0
  %161 = vmatpush1.msra.mxu0 0.0
  %162 = vmatprep.subr.mxu0 0.0
  %163 = vmatpush1.msra.mxu0 0.0
  %164 = vmatprep.subr.mxu0 0.0
  %165 = vmatpush1.msra.mxu0 0.0
  %166 = vmatprep.subr.mxu0 0.0
  %167 = vmatpush1.msra.mxu0 0.0
  %168 = vmatprep.subr.mxu0 0.0
  %169 = vmatpush1.msra.mxu0 0.0
  %170 = vmatprep.subr.mxu0 0.0
  %171 = vmatpush1.msra.mxu0 0.0
  %172 = vmatprep.subr.mxu0 0.0
  %173 = vmatpush1.msra.mxu0 0.0
  %174 = vmatprep.subr.mxu0 0.0
  %175 = vmatpush1.msra.mxu0 0.0
  %176 = vmatprep.subr.mxu0 0.0
  %177 = vmatpush1.msra.mxu0 0.0
  %178 = vmatprep.subr.mxu0 0.0
  %179 = vmatpush1.msra.mxu0 0.0
  %180 = vmatprep.subr.mxu0 0.0
  %181 = vmatpush1.msra.mxu0 0.0
  %182 = vmatprep.subr.mxu0 0.0
  %183 = vmatpush1.msra.mxu0 0.0
  %184 = vmatprep.subr.mxu0 0.0
  %185 = vmatpush1.msra.mxu0 0.0
  %186 = vmatprep.subr.mxu0 0.0
  %187 = vmatpush1.msra.mxu0 0.0
  %188 = vmatprep.subr.mxu0 0.0
  %189 = vmatpush1.msra.mxu0 0.0
  %190 = vmatprep.subr.mxu0 0.0
  %191 = vmatpush1.msra.mxu0 0.0
  %192 = vmatprep.subr.mxu0 0.0
  %193 = vmatpush1.msra.mxu0 0.0
  %194 = vmatprep.subr.mxu0 0.0
  %195 = vmatpush1.msra.mxu0 0.0
  %196 = vmatprep.subr.mxu0 0.0
  %197 = vmatpush1.msra.mxu0 0.0
  %198 = vmatprep.subr.mxu0 0.0
  %199 = vmatpush1.msra.mxu0 0.0
  %200 = vmatprep.mubr.f32.mxu0 0.0
  %201 = vmatmul.mubr.f32.gmra.mrb[0].mxu0 %v130
  %v202 = vpop.f32.mrb[0].mxu0
  %v203 = vadd.f32 %v127, %v202
  %v204 = vpop.f32.mrb[0].mxu0
  %205 = vdwg.mxu0
  %v206 = vld [vmem:[#allocation2] sm:$0x3]
  %v208 = vsel %vm132, %v24, 0
  %210 = vmatprep.subr.mxu0 0.0
  %211 = vmatpush1.msra.mxu0 %v208
  %212 = vmatprep.subr.mxu0 0.0
  %213 = vmatpush1.msra.mxu0 0.0
  %214 = vmatprep.subr.mxu0 0.0
  %215 = vmatpush1.msra.mxu0 0.0
  %216 = vmatprep.subr.mxu0 0.0
  %217 = vmatpush1.msra.mxu0 0.0
  %218 = vmatprep.subr.mxu0 0.0
  %219 = vmatpush1.msra.mxu0 0.0
  %220 = vmatprep.subr.mxu0 0.0
  %221 = vmatpush1.msra.mxu0 0.0
  %222 = vmatprep.subr.mxu0 0.0
  %223 = vmatpush1.msra.mxu0 0.0
  %224 = vmatprep.subr.mxu0 0.0
  %225 = vmatpush1.msra.mxu0 0.0
  %226 = vmatprep.subr.mxu0 0.0
  %227 = vmatpush1.msra.mxu0 0.0
  %228 = vmatprep.subr.mxu0 0.0
  %229 = vmatpush1.msra.mxu0 0.0
  %230 = vmatprep.subr.mxu0 0.0
  %231 = vmatpush1.msra.mxu0 0.0
  %232 = vmatprep.subr.mxu0 0.0
  %233 = vmatpush1.msra.mxu0 0.0
  %234 = vmatprep.subr.mxu0 0.0
  %235 = vmatpush1.msra.mxu0 0.0
  %236 = vmatprep.subr.mxu0 0.0
  %237 = vmatpush1.msra.mxu0 0.0
  %238 = vmatprep.subr.mxu0 0.0
  %239 = vmatpush1.msra.mxu0 0.0
  %240 = vmatprep.subr.mxu0 0.0
  %241 = vmatpush1.msra.mxu0 0.0
  %242 = vmatprep.subr.mxu0 0.0
  %243 = vmatpush1.msra.mxu0 0.0
  %244 = vmatprep.subr.mxu0 0.0
  %245 = vmatpush1.msra.mxu0 0.0
  %246 = vmatprep.subr.mxu0 0.0
  %247 = vmatpush1.msra.mxu0 0.0
  %248 = vmatprep.subr.mxu0 0.0
  %249 = vmatpush1.msra.mxu0 0.0
  %250 = vmatprep.subr.mxu0 0.0
  %251 = vmatpush1.msra.mxu0 0.0
  %252 = vmatprep.subr.mxu0 0.0
  %253 = vmatpush1.msra.mxu0 0.0
  %254 = vmatprep.subr.mxu0 0.0
  %255 = vmatpush1.msra.mxu0 0.0
  %256 = vmatprep.subr.mxu0 0.0
  %257 = vmatpush1.msra.mxu0 0.0
  %258 = vmatprep.subr.mxu0 0.0
  %259 = vmatpush1.msra.mxu0 0.0
  %260 = vmatprep.subr.mxu0 0.0
  %261 = vmatpush1.msra.mxu0 0.0
  %262 = vmatprep.subr.mxu0 0.0
  %263 = vmatpush1.msra.mxu0 0.0
  %264 = vmatprep.subr.mxu0 0.0
  %265 = vmatpush1.msra.mxu0 0.0
  %266 = vmatprep.subr.mxu0 0.0
  %267 = vmatpush1.msra.mxu0 0.0
  %268 = vmatprep.subr.mxu0 0.0
  %269 = vmatpush1.msra.mxu0 0.0
  %270 = vmatprep.subr.mxu0 0.0
  %271 = vmatpush1.msra.mxu0 0.0
  %272 = vmatprep.subr.mxu0 0.0
  %273 = vmatpush1.msra.mxu0 0.0
  %274 = vmatprep.mubr.f32.mxu0 0.0
  %275 = vmatmul.mubr.f32.gmra.mrb[0].mxu0 %v130
  %v276 = vpop.f32.mrb[0].mxu0
  %v277 = vadd.f32 0.0, %v276
  %v278 = vpop.f32.mrb[0].mxu0
  %279 = vdwg.mxu0
  %v280 = vadd.f32 %v206, %v277
  %v281 = vxor.u32 %v280, 2147483648
  %v282 = vmul.f32 %v281, 1.442695
  %v283 = vpow.pop %v282
  %v284 = vadd.f32 %v283, 1.0
  %v285 = vrcp.pop %v284
  %v286 = vmul.f32 1.0, %v285
  %v287 = vtanh.pop %v280
  %v288 = vmul.f32 %v286, 0.0
  %290 = vrot.lane.b32.xlu0 %v287, 116
  %v291 = vpop.permute.xlu0 %290
  %v293 = vmul.f32 %v286, %v291
  %295 = vrot.lane.b32.xlu0 %v293, 6
  %v296 = vpop.permute.xlu0 %295
  %v298 = vadd.f32 %v288, %v296
  %v299 = vtanh.pop %v298
  %301 = vrot.lane.b32.xlu0 %v299, 12
  %v302 = vpop.permute.xlu0 %301
  %v304 = vmul.f32 %v286, %v302
  %306 = vrot.lane.b32.xlu0 %v304, 110
  %v307 = vpop.permute.xlu0 %306
  %v308 = vsel %vm128, %v307, 0
  %v311 = vsel %vm132, %v25, 0
  %313 = vmatprep.subr.mxu0 0.0
  %314 = vmatpush1.msra.mxu0 %v311
  %315 = vmatprep.subr.mxu0 0.0
  %316 = vmatpush1.msra.mxu0 0.0
  %317 = vmatprep.subr.mxu0 0.0
  %318 = vmatpush1.msra.mxu0 0.0
  %319 = vmatprep.subr.mxu0 0.0
  %320 = vmatpush1.msra.mxu0 0.0
  %321 = vmatprep.subr.mxu0 0.0
  %322 = vmatpush1.msra.mxu0 0.0
  %323 = vmatprep.subr.mxu0 0.0
  %324 = vmatpush1.msra.mxu0 0.0
  %325 = vmatprep.subr.mxu0 0.0
  %326 = vmatpush1.msra.mxu0 0.0
  %327 = vmatprep.subr.mxu0 0.0
  %328 = vmatpush1.msra.mxu0 0.0
  %329 = vmatprep.subr.mxu0 0.0
  %330 = vmatpush1.msra.mxu0 0.0
  %331 = vmatprep.subr.mxu0 0.0
  %332 = vmatpush1.msra.mxu0 0.0
  %333 = vmatprep.subr.mxu0 0.0
  %334 = vmatpush1.msra.mxu0 0.0
  %335 = vmatprep.subr.mxu0 0.0
  %336 = vmatpush1.msra.mxu0 0.0
  %337 = vmatprep.subr.mxu0 0.0
  %338 = vmatpush1.msra.mxu0 0.0
  %339 = vmatprep.subr.mxu0 0.0
  %340 = vmatpush1.msra.mxu0 0.0
  %341 = vmatprep.subr.mxu0 0.0
  %342 = vmatpush1.msra.mxu0 0.0
  %343 = vmatprep.subr.mxu0 0.0
  %344 = vmatpush1.msra.mxu0 0.0
  %345 = vmatprep.subr.mxu0 0.0
  %346 = vmatpush1.msra.mxu0 0.0
  %347 = vmatprep.subr.mxu0 0.0
  %348 = vmatpush1.msra.mxu0 0.0
  %349 = vmatprep.subr.mxu0 0.0
  %350 = vmatpush1.msra.mxu0 0.0
  %351 = vmatprep.subr.mxu0 0.0
  %352 = vmatpush1.msra.mxu0 0.0
  %353 = vmatprep.subr.mxu0 0.0
  %354 = vmatpush1.msra.mxu0 0.0
  %355 = vmatprep.subr.mxu0 0.0
  %356 = vmatpush1.msra.mxu0 0.0
  %357 = vmatprep.subr.mxu0 0.0
  %358 = vmatpush1.msra.mxu0 0.0
  %359 = vmatprep.subr.mxu0 0.0
  %360 = vmatpush1.msra.mxu0 0.0
  %361 = vmatprep.subr.mxu0 0.0
  %362 = vmatpush1.msra.mxu0 0.0
  %363 = vmatprep.subr.mxu0 0.0
  %364 = vmatpush1.msra.mxu0 0.0
  %365 = vmatprep.subr.mxu0 0.0
  %366 = vmatpush1.msra.mxu0 0.0
  %367 = vmatprep.subr.mxu0 0.0
  %368 = vmatpush1.msra.mxu0 0.0
  %369 = vmatprep.subr.mxu0 0.0
  %370 = vmatpush1.msra.mxu0 0.0
  %371 = vmatprep.subr.mxu0 0.0
  %372 = vmatpush1.msra.mxu0 0.0
  %373 = vmatprep.subr.mxu0 0.0
  %374 = vmatpush1.msra.mxu0 0.0
  %375 = vmatprep.subr.mxu0 0.0
  %376 = vmatpush1.msra.mxu0 0.0
  %377 = vmatprep.mubr.f32.mxu0 0.0
  %378 = vmatmul.mubr.f32.gmra.mrb[0].mxu0 %v308
  %v379 = vpop.f32.mrb[0].mxu0
  %v380 = vadd.f32 0.0, %v379
  %v381 = vpop.f32.mrb[0].mxu0
  %382 = vdwg.mxu0
  %v383 = vadd.f32 %v203, %v380
  %v384 = vxor.u32 %v383, 2147483648
  %v385 = vmul.f32 %v384, 1.442695
  %v386 = vpow.pop %v385
  %v387 = vadd.f32 %v386, 1.0
  %v388 = vrcp.pop %v387
  %v389 = vmul.f32 1.0, %v388
  %v390 = vtanh.pop %v383
  %v391 = vmul.f32 %v389, 0.0
  %393 = vrot.lane.b32.xlu0 %v390, 116
  %v394 = vpop.permute.xlu0 %393
  %v396 = vmul.f32 %v389, %v394
  %398 = vrot.lane.b32.xlu0 %v396, 6
  %v399 = vpop.permute.xlu0 %398
  %v401 = vadd.f32 %v391, %v399
  %v402 = vtanh.pop %v401
  %404 = vrot.lane.b32.xlu0 %v402, 12
  %v405 = vpop.permute.xlu0 %404
  %v407 = vmul.f32 %v389, %v405
  %409 = vrot.lane.b32.xlu0 %v407, 110
  %v410 = vpop.permute.xlu0 %409
  %vm412 = vcmask 41984
  %413 = vst.msk [vmem:[#allocation3] sm:$0x3] %vm412, %v410
  %v414 = vsel %vm128, %v410, 0
  %416 = vmatprep.subr.mxu0 0.0
  %417 = vmatpush1.msra.mxu0 %v134
  %418 = vmatprep.subr.mxu0 0.0
  %419 = vmatpush1.msra.mxu0 0.0
  %420 = vmatprep.subr.mxu0 0.0
  %421 = vmatpush1.msra.mxu0 0.0
  %422 = vmatprep.subr.mxu0 0.0
  %423 = vmatpush1.msra.mxu0 0.0
  %424 = vmatprep.subr.mxu0 0.0
  %425 = vmatpush1.msra.mxu0 0.0
  %426 = vmatprep.subr.mxu0 0.0
  %427 = vmatpush1.msra.mxu0 0.0
  %428 = vmatprep.subr.mxu0 0.0
  %429 = vmatpush1.msra.mxu0 0.0
  %430 = vmatprep.subr.mxu0 0.0
  %431 = vmatpush1.msra.mxu0 0.0
  %432 = vmatprep.subr.mxu0 0.0
  %433 = vmatpush1.msra.mxu0 0.0
  %434 = vmatprep.subr.mxu0 0.0
  %435 = vmatpush1.msra.mxu0 0.0
  %436 = vmatprep.subr.mxu0 0.0
  %437 = vmatpush1.msra.mxu0 0.0
  %438 = vmatprep.subr.mxu0 0.0
  %439 = vmatpush1.msra.mxu0 0.0
  %440 = vmatprep.subr.mxu0 0.0
  %441 = vmatpush1.msra.mxu0 0.0
  %442 = vmatprep.subr.mxu0 0.0
  %443 = vmatpush1.msra.mxu0 0.0
  %444 = vmatprep.subr.mxu0 0.0
  %445 = vmatpush1.msra.mxu0 0.0
  %446 = vmatprep.subr.mxu0 0.0
  %447 = vmatpush1.msra.mxu0 0.0
  %448 = vmatprep.subr.mxu0 0.0
  %449 = vmatpush1.msra.mxu0 0.0
  %450 = vmatprep.subr.mxu0 0.0
  %451 = vmatpush1.msra.mxu0 0.0
  %452 = vmatprep.subr.mxu0 0.0
  %453 = vmatpush1.msra.mxu0 0.0
  %454 = vmatprep.subr.mxu0 0.0
  %455 = vmatpush1.msra.mxu0 0.0
  %456 = vmatprep.subr.mxu0 0.0
  %457 = vmatpush1.msra.mxu0 0.0
  %458 = vmatprep.subr.mxu0 0.0
  %459 = vmatpush1.msra.mxu0 0.0
  %460 = vmatprep.subr.mxu0 0.0
  %461 = vmatpush1.msra.mxu0 0.0
  %462 = vmatprep.subr.mxu0 0.0
  %463 = vmatpush1.msra.mxu0 0.0
  %464 = vmatprep.subr.mxu0 0.0
  %465 = vmatpush1.msra.mxu0 0.0
  %466 = vmatprep.subr.mxu0 0.0
  %467 = vmatpush1.msra.mxu0 0.0
  %468 = vmatprep.subr.mxu0 0.0
  %469 = vmatpush1.msra.mxu0 0.0
  %470 = vmatprep.subr.mxu0 0.0
  %471 = vmatpush1.msra.mxu0 0.0
  %472 = vmatprep.subr.mxu0 0.0
  %473 = vmatpush1.msra.mxu0 0.0
  %474 = vmatprep.subr.mxu0 0.0
  %475 = vmatpush1.msra.mxu0 0.0
  %476 = vmatprep.subr.mxu0 0.0
  %477 = vmatpush1.msra.mxu0 0.0
  %478 = vmatprep.subr.mxu0 0.0
  %479 = vmatpush1.msra.mxu0 0.0
  %480 = vmatprep.mubr.f32.mxu0 0.0
  %481 = vmatmul.mubr.f32.gmra.mrb[0].mxu0 %v414
  %v482 = vpop.f32.mrb[0].mxu0
  %v483 = vadd.f32 %v127, %v482
  %v484 = vpop.f32.mrb[0].mxu0
  %485 = vdwg.mxu0
  %v486 = vld [vmem:[#allocation2 + $0x2] sm:$0x3]
  %487 = vmatprep.subr.mxu0 0.0
  %488 = vmatpush1.msra.mxu0 %v208
  %489 = vmatprep.subr.mxu0 0.0
  %490 = vmatpush1.msra.mxu0 0.0
  %491 = vmatprep.subr.mxu0 0.0
  %492 = vmatpush1.msra.mxu0 0.0
  %493 = vmatprep.subr.mxu0 0.0
  %494 = vmatpush1.msra.mxu0 0.0
  %495 = vmatprep.subr.mxu0 0.0
  %496 = vmatpush1.msra.mxu0 0.0
  %497 = vmatprep.subr.mxu0 0.0
  %498 = vmatpush1.msra.mxu0 0.0
  %499 = vmatprep.subr.mxu0 0.0
  %500 = vmatpush1.msra.mxu0 0.0
  %501 = vmatprep.subr.mxu0 0.0
  %502 = vmatpush1.msra.mxu0 0.0
  %503 = vmatprep.subr.mxu0 0.0
  %504 = vmatpush1.msra.mxu0 0.0
  %505 = vmatprep.subr.mxu0 0.0
  %506 = vmatpush1.msra.mxu0 0.0
  %507 = vmatprep.subr.mxu0 0.0
  %508 = vmatpush1.msra.mxu0 0.0
  %509 = vmatprep.subr.mxu0 0.0
  %510 = vmatpush1.msra.mxu0 0.0
  %511 = vmatprep.subr.mxu0 0.0
  %512 = vmatpush1.msra.mxu0 0.0
  %513 = vmatprep.subr.mxu0 0.0
  %514 = vmatpush1.msra.mxu0 0.0
  %515 = vmatprep.subr.mxu0 0.0
  %516 = vmatpush1.msra.mxu0 0.0
  %517 = vmatprep.subr.mxu0 0.0
  %518 = vmatpush1.msra.mxu0 0.0
  %519 = vmatprep.subr.mxu0 0.0
  %520 = vmatpush1.msra.mxu0 0.0
  %521 = vmatprep.subr.mxu0 0.0
  %522 = vmatpush1.msra.mxu0 0.0
  %523 = vmatprep.subr.mxu0 0.0
  %524 = vmatpush1.msra.mxu0 0.0
  %525 = vmatprep.subr.mxu0 0.0
  %526 = vmatpush1.msra.mxu0 0.0
  %527 = vmatprep.subr.mxu0 0.0
  %528 = vmatpush1.msra.mxu0 0.0
  %529 = vmatprep.subr.mxu0 0.0
  %530 = vmatpush1.msra.mxu0 0.0
  %531 = vmatprep.subr.mxu0 0.0
  %532 = vmatpush1.msra.mxu0 0.0
  %533 = vmatprep.subr.mxu0 0.0
  %534 = vmatpush1.msra.mxu0 0.0
  %535 = vmatprep.subr.mxu0 0.0
  %536 = vmatpush1.msra.mxu0 0.0
  %537 = vmatprep.subr.mxu0 0.0
  %538 = vmatpush1.msra.mxu0 0.0
  %539 = vmatprep.subr.mxu0 0.0
  %540 = vmatpush1.msra.mxu0 0.0
  %541 = vmatprep.subr.mxu0 0.0
  %542 = vmatpush1.msra.mxu0 0.0
  %543 = vmatprep.subr.mxu0 0.0
  %544 = vmatpush1.msra.mxu0 0.0
  %545 = vmatprep.subr.mxu0 0.0
  %546 = vmatpush1.msra.mxu0 0.0
  %547 = vmatprep.subr.mxu0 0.0
  %548 = vmatpush1.msra.mxu0 0.0
  %549 = vmatprep.subr.mxu0 0.0
  %550 = vmatpush1.msra.mxu0 0.0
  %551 = vmatprep.mubr.f32.mxu0 0.0
  %552 = vmatmul.mubr.f32.gmra.mrb[0].mxu0 %v308
  %v553 = vpop.f32.mrb[0].mxu0
  %v554 = vadd.f32 0.0, %v553
  %v555 = vpop.f32.mrb[0].mxu0
  %556 = vdwg.mxu0
  %v557 = vadd.f32 %v486, %v554
  %v558 = vxor.u32 %v557, 2147483648
  %v559 = vmul.f32 %v558, 1.442695
  %v560 = vpow.pop %v559
  %v561 = vadd.f32 %v560, 1.0
  %v562 = vrcp.pop %v561
  %v563 = vmul.f32 1.0, %v562
  %v564 = vtanh.pop %v557
  %v565 = vmul.f32 %v563, %v298
  %567 = vrot.lane.b32.xlu0 %v564, 116
  %v568 = vpop.permute.xlu0 %567
  %v570 = vmul.f32 %v563, %v568
  %572 = vrot.lane.b32.xlu0 %v570, 6
  %v573 = vpop.permute.xlu0 %572
  %v575 = vadd.f32 %v565, %v573
  %v576 = vtanh.pop %v575
  %578 = vrot.lane.b32.xlu0 %v576, 12
  %v579 = vpop.permute.xlu0 %578
  %v581 = vmul.f32 %v563, %v579
  %583 = vrot.lane.b32.xlu0 %v581, 110
  %v584 = vpop.permute.xlu0 %583
  %v585 = vsel %vm128, %v584, 0
  %587 = vmatprep.subr.mxu0 0.0
  %588 = vmatpush1.msra.mxu0 %v311
  %589 = vmatprep.subr.mxu0 0.0
  %590 = vmatpush1.msra.mxu0 0.0
  %591 = vmatprep.subr.mxu0 0.0
  %592 = vmatpush1.msra.mxu0 0.0
  %593 = vmatprep.subr.mxu0 0.0
  %594 = vmatpush1.msra.mxu0 0.0
  %595 = vmatprep.subr.mxu0 0.0
  %596 = vmatpush1.msra.mxu0 0.0
  %597 = vmatprep.subr.mxu0 0.0
  %598 = vmatpush1.msra.mxu0 0.0
  %599 = vmatprep.subr.mxu0 0.0
  %600 = vmatpush1.msra.mxu0 0.0
  %601 = vmatprep.subr.mxu0 0.0
  %602 = vmatpush1.msra.mxu0 0.0
  %603 = vmatprep.subr.mxu0 0.0
  %604 = vmatpush1.msra.mxu0 0.0
  %605 = vmatprep.subr.mxu0 0.0
  %606 = vmatpush1.msra.mxu0 0.0
  %607 = vmatprep.subr.mxu0 0.0
  %608 = vmatpush1.msra.mxu0 0.0
  %609 = vmatprep.subr.mxu0 0.0
  %610 = vmatpush1.msra.mxu0 0.0
  %611 = vmatprep.subr.mxu0 0.0
  %612 = vmatpush1.msra.mxu0 0.0
  %613 = vmatprep.subr.mxu0 0.0
  %614 = vmatpush1.msra.mxu0 0.0
  %615 = vmatprep.subr.mxu0 0.0
  %616 = vmatpush1.msra.mxu0 0.0
  %617 = vmatprep.subr.mxu0 0.0
  %618 = vmatpush1.msra.mxu0 0.0
  %619 = vmatprep.subr.mxu0 0.0
  %620 = vmatpush1.msra.mxu0 0.0
  %621 = vmatprep.subr.mxu0 0.0
  %622 = vmatpush1.msra.mxu0 0.0
  %623 = vmatprep.subr.mxu0 0.0
  %624 = vmatpush1.msra.mxu0 0.0
  %625 = vmatprep.subr.mxu0 0.0
  %626 = vmatpush1.msra.mxu0 0.0
  %627 = vmatprep.subr.mxu0 0.0
  %628 = vmatpush1.msra.mxu0 0.0
  %629 = vmatprep.subr.mxu0 0.0
  %630 = vmatpush1.msra.mxu0 0.0
  %631 = vmatprep.subr.mxu0 0.0
  %632 = vmatpush1.msra.mxu0 0.0
  %633 = vmatprep.subr.mxu0 0.0
  %634 = vmatpush1.msra.mxu0 0.0
  %635 = vmatprep.subr.mxu0 0.0
  %636 = vmatpush1.msra.mxu0 0.0
  %637 = vmatprep.subr.mxu0 0.0
  %638 = vmatpush1.msra.mxu0 0.0
  %639 = vmatprep.subr.mxu0 0.0
  %640 = vmatpush1.msra.mxu0 0.0
  %641 = vmatprep.subr.mxu0 0.0
  %642 = vmatpush1.msra.mxu0 0.0
  %643 = vmatprep.subr.mxu0 0.0
  %644 = vmatpush1.msra.mxu0 0.0
  %645 = vmatprep.subr.mxu0 0.0
  %646 = vmatpush1.msra.mxu0 0.0
  %647 = vmatprep.subr.mxu0 0.0
  %648 = vmatpush1.msra.mxu0 0.0
  %649 = vmatprep.subr.mxu0 0.0
  %650 = vmatpush1.msra.mxu0 0.0
  %651 = vmatprep.mubr.f32.mxu0 0.0
  %652 = vmatmul.mubr.f32.gmra.mrb[0].mxu0 %v585
  %v653 = vpop.f32.mrb[0].mxu0
  %v654 = vadd.f32 0.0, %v653
  %v655 = vpop.f32.mrb[0].mxu0
  %656 = vdwg.mxu0
  %v657 = vadd.f32 %v483, %v654
  %v658 = vxor.u32 %v657, 2147483648
  %v659 = vmul.f32 %v658, 1.442695
  %v660 = vpow.pop %v659
  %v661 = vadd.f32 %v660, 1.0
  %v662 = vrcp.pop %v661
  %v663 = vmul.f32 1.0, %v662
  %v664 = vtanh.pop %v657
  %v665 = vmul.f32 %v663, %v401
  %667 = vrot.lane.b32.xlu0 %v664, 116
  %v668 = vpop.permute.xlu0 %667
  %v670 = vmul.f32 %v663, %v668
  %672 = vrot.lane.b32.xlu0 %v670, 6
  %v673 = vpop.permute.xlu0 %672
  %v675 = vadd.f32 %v665, %v673
  %v676 = vtanh.pop %v675
  %678 = vrot.lane.b32.xlu0 %v676, 12
  %v679 = vpop.permute.xlu0 %678
  %v681 = vmul.f32 %v663, %v679
  %683 = vrot.lane.b32.xlu0 %v681, 110
  %v684 = vpop.permute.xlu0 %683
  %686 = vst.msk [vmem:[#allocation3 + $0x2] sm:$0x3] %vm412, %v684
  %v687 = vsel %vm128, %v684, 0
  %689 = vmatprep.subr.mxu0 0.0
  %690 = vmatpush1.msra.mxu0 %v134
  %691 = vmatprep.subr.mxu0 0.0
  %692 = vmatpush1.msra.mxu0 0.0
  %693 = vmatprep.subr.mxu0 0.0
  %694 = vmatpush1.msra.mxu0 0.0
  %695 = vmatprep.subr.mxu0 0.0
  %696 = vmatpush1.msra.mxu0 0.0
  %697 = vmatprep.subr.mxu0 0.0
  %698 = vmatpush1.msra.mxu0 0.0
  %699 = vmatprep.subr.mxu0 0.0
  %700 = vmatpush1.msra.mxu0 0.0
  %701 = vmatprep.subr.mxu0 0.0
  %702 = vmatpush1.msra.mxu0 0.0
  %703 = vmatprep.subr.mxu0 0.0
  %704 = vmatpush1.msra.mxu0 0.0
  %705 = vmatprep.subr.mxu0 0.0
  %706 = vmatpush1.msra.mxu0 0.0
  %707 = vmatprep.subr.mxu0 0.0
  %708 = vmatpush1.msra.mxu0 0.0
  %709 = vmatprep.subr.mxu0 0.0
  %710 = vmatpush1.msra.mxu0 0.0
  %711 = vmatprep.subr.mxu0 0.0
  %712 = vmatpush1.msra.mxu0 0.0
  %713 = vmatprep.subr.mxu0 0.0
  %714 = vmatpush1.msra.mxu0 0.0
  %715 = vmatprep.subr.mxu0 0.0
  %716 = vmatpush1.msra.mxu0 0.0
  %717 = vmatprep.subr.mxu0 0.0
  %718 = vmatpush1.msra.mxu0 0.0
  %719 = vmatprep.subr.mxu0 0.0
  %720 = vmatpush1.msra.mxu0 0.0
  %721 = vmatprep.subr.mxu0 0.0
  %722 = vmatpush1.msra.mxu0 0.0
  %723 = vmatprep.subr.mxu0 0.0
  %724 = vmatpush1.msra.mxu0 0.0
  %725 = vmatprep.subr.mxu0 0.0
  %726 = vmatpush1.msra.mxu0 0.0
  %727 = vmatprep.subr.mxu0 0.0
  %728 = vmatpush1.msra.mxu0 0.0
  %729 = vmatprep.subr.mxu0 0.0
  %730 = vmatpush1.msra.mxu0 0.0
  %731 = vmatprep.subr.mxu0 0.0
  %732 = vmatpush1.msra.mxu0 0.0
  %733 = vmatprep.subr.mxu0 0.0
  %734 = vmatpush1.msra.mxu0 0.0
  %735 = vmatprep.subr.mxu0 0.0
  %736 = vmatpush1.msra.mxu0 0.0
  %737 = vmatprep.subr.mxu0 0.0
  %738 = vmatpush1.msra.mxu0 0.0
  %739 = vmatprep.subr.mxu0 0.0
  %740 = vmatpush1.msra.mxu0 0.0
  %741 = vmatprep.subr.mxu0 0.0
  %742 = vmatpush1.msra.mxu0 0.0
  %743 = vmatprep.subr.mxu0 0.0
  %744 = vmatpush1.msra.mxu0 0.0
  %745 = vmatprep.subr.mxu0 0.0
  %746 = vmatpush1.msra.mxu0 0.0
  %747 = vmatprep.subr.mxu0 0.0
  %748 = vmatpush1.msra.mxu0 0.0
  %749 = vmatprep.subr.mxu0 0.0
  %750 = vmatpush1.msra.mxu0 0.0
  %751 = vmatprep.subr.mxu0 0.0
  %752 = vmatpush1.msra.mxu0 0.0
  %753 = vmatprep.mubr.f32.mxu0 0.0
  %754 = vmatmul.mubr.f32.gmra.mrb[0].mxu0 %v687
  %v755 = vpop.f32.mrb[0].mxu0
  %v756 = vadd.f32 %v127, %v755
  %v757 = vpop.f32.mrb[0].mxu0
  %758 = vdwg.mxu0
  %v759 = vld [vmem:[#allocation2 + $0x4] sm:$0x3]
  %760 = vmatprep.subr.mxu0 0.0
  %761 = vmatpush1.msra.mxu0 %v208
  %762 = vmatprep.subr.mxu0 0.0
  %763 = vmatpush1.msra.mxu0 0.0
  %764 = vmatprep.subr.mxu0 0.0
  %765 = vmatpush1.msra.mxu0 0.0
  %766 = vmatprep.subr.mxu0 0.0
  %767 = vmatpush1.msra.mxu0 0.0
  %768 = vmatprep.subr.mxu0 0.0
  %769 = vmatpush1.msra.mxu0 0.0
  %770 = vmatprep.subr.mxu0 0.0
  %771 = vmatpush1.msra.mxu0 0.0
  %772 = vmatprep.subr.mxu0 0.0
  %773 = vmatpush1.msra.mxu0 0.0
  %774 = vmatprep.subr.mxu0 0.0
  %775 = vmatpush1.msra.mxu0 0.0
  %776 = vmatprep.subr.mxu0 0.0
  %777 = vmatpush1.msra.mxu0 0.0
  %778 = vmatprep.subr.mxu0 0.0
  %779 = vmatpush1.msra.mxu0 0.0
  %780 = vmatprep.subr.mxu0 0.0
  %781 = vmatpush1.msra.mxu0 0.0
  %782 = vmatprep.subr.mxu0 0.0
  %783 = vmatpush1.msra.mxu0 0.0
  %784 = vmatprep.subr.mxu0 0.0
  %785 = vmatpush1.msra.mxu0 0.0
  %786 = vmatprep.subr.mxu0 0.0
  %787 = vmatpush1.msra.mxu0 0.0
  %788 = vmatprep.subr.mxu0 0.0
  %789 = vmatpush1.msra.mxu0 0.0
  %790 = vmatprep.subr.mxu0 0.0
  %791 = vmatpush1.msra.mxu0 0.0
  %792 = vmatprep.subr.mxu0 0.0
  %793 = vmatpush1.msra.mxu0 0.0
  %794 = vmatprep.subr.mxu0 0.0
  %795 = vmatpush1.msra.mxu0 0.0
  %796 = vmatprep.subr.mxu0 0.0
  %797 = vmatpush1.msra.mxu0 0.0
  %798 = vmatprep.subr.mxu0 0.0
  %799 = vmatpush1.msra.mxu0 0.0
  %800 = vmatprep.subr.mxu0 0.0
  %801 = vmatpush1.msra.mxu0 0.0
  %802 = vmatprep.subr.mxu0 0.0
  %803 = vmatpush1.msra.mxu0 0.0
  %804 = vmatprep.subr.mxu0 0.0
  %805 = vmatpush1.msra.mxu0 0.0
  %806 = vmatprep.subr.mxu0 0.0
  %807 = vmatpush1.msra.mxu0 0.0
  %808 = vmatprep.subr.mxu0 0.0
  %809 = vmatpush1.msra.mxu0 0.0
  %810 = vmatprep.subr.mxu0 0.0
  %811 = vmatpush1.msra.mxu0 0.0
  %812 = vmatprep.subr.mxu0 0.0
  %813 = vmatpush1.msra.mxu0 0.0
  %814 = vmatprep.subr.mxu0 0.0
  %815 = vmatpush1.msra.mxu0 0.0
  %816 = vmatprep.subr.mxu0 0.0
  %817 = vmatpush1.msra.mxu0 0.0
  %818 = vmatprep.subr.mxu0 0.0
  %819 = vmatpush1.msra.mxu0 0.0
  %820 = vmatprep.subr.mxu0 0.0
  %821 = vmatpush1.msra.mxu0 0.0
  %822 = vmatprep.subr.mxu0 0.0
  %823 = vmatpush1.msra.mxu0 0.0
  %824 = vmatprep.mubr.f32.mxu0 0.0
  %825 = vmatmul.mubr.f32.gmra.mrb[0].mxu0 %v585
  %v826 = vpop.f32.mrb[0].mxu0
  %v827 = vadd.f32 0.0, %v826
  %v828 = vpop.f32.mrb[0].mxu0
  %829 = vdwg.mxu0
  %v830 = vadd.f32 %v759, %v827
  %v831 = vxor.u32 %v830, 2147483648
  %v832 = vmul.f32 %v831, 1.442695
  %v833 = vpow.pop %v832
  %v834 = vadd.f32 %v833, 1.0
  %v835 = vrcp.pop %v834
  %v836 = vmul.f32 1.0, %v835
  %v837 = vtanh.pop %v830
  %v838 = vmul.f32 %v836, %v575
  %840 = vrot.lane.b32.xlu0 %v837, 116
  %v841 = vpop.permute.xlu0 %840
  %v843 = vmul.f32 %v836, %v841
  %845 = vrot.lane.b32.xlu0 %v843, 6
  %v846 = vpop.permute.xlu0 %845
  %v848 = vadd.f32 %v838, %v846
  %v849 = vtanh.pop %v848
  %851 = vrot.lane.b32.xlu0 %v849, 12
  %v852 = vpop.permute.xlu0 %851
  %v854 = vmul.f32 %v836, %v852
  %856 = vrot.lane.b32.xlu0 %v854, 110
  %v857 = vpop.permute.xlu0 %856
  %v858 = vsel %vm128, %v857, 0
  %860 = vmatprep.subr.mxu0 0.0
  %861 = vmatpush1.msra.mxu0 %v311
  %862 = vmatprep.subr.mxu0 0.0
  %863 = vmatpush1.msra.mxu0 0.0
  %864 = vmatprep.subr.mxu0 0.0
  %865 = vmatpush1.msra.mxu0 0.0
  %866 = vmatprep.subr.mxu0 0.0
  %867 = vmatpush1.msra.mxu0 0.0
  %868 = vmatprep.subr.mxu0 0.0
  %869 = vmatpush1.msra.mxu0 0.0
  %870 = vmatprep.subr.mxu0 0.0
  %871 = vmatpush1.msra.mxu0 0.0
  %872 = vmatprep.subr.mxu0 0.0
  %873 = vmatpush1.msra.mxu0 0.0
  %874 = vmatprep.subr.mxu0 0.0
  %875 = vmatpush1.msra.mxu0 0.0
  %876 = vmatprep.subr.mxu0 0.0
  %877 = vmatpush1.msra.mxu0 0.0
  %878 = vmatprep.subr.mxu0 0.0
  %879 = vmatpush1.msra.mxu0 0.0
  %880 = vmatprep.subr.mxu0 0.0
  %881 = vmatpush1.msra.mxu0 0.0
  %882 = vmatprep.subr.mxu0 0.0
  %883 = vmatpush1.msra.mxu0 0.0
  %884 = vmatprep.subr.mxu0 0.0
  %885 = vmatpush1.msra.mxu0 0.0
  %886 = vmatprep.subr.mxu0 0.0
  %887 = vmatpush1.msra.mxu0 0.0
  %888 = vmatprep.subr.mxu0 0.0
  %889 = vmatpush1.msra.mxu0 0.0
  %890 = vmatprep.subr.mxu0 0.0
  %891 = vmatpush1.msra.mxu0 0.0
  %892 = vmatprep.subr.mxu0 0.0
  %893 = vmatpush1.msra.mxu0 0.0
  %894 = vmatprep.subr.mxu0 0.0
  %895 = vmatpush1.msra.mxu0 0.0
  %896 = vmatprep.subr.mxu0 0.0
  %897 = vmatpush1.msra.mxu0 0.0
  %898 = vmatprep.subr.mxu0 0.0
  %899 = vmatpush1.msra.mxu0 0.0
  %900 = vmatprep.subr.mxu0 0.0
  %901 = vmatpush1.msra.mxu0 0.0
  %902 = vmatprep.subr.mxu0 0.0
  %903 = vmatpush1.msra.mxu0 0.0
  %904 = vmatprep.subr.mxu0 0.0
  %905 = vmatpush1.msra.mxu0 0.0
  %906 = vmatprep.subr.mxu0 0.0
  %907 = vmatpush1.msra.mxu0 0.0
  %908 = vmatprep.subr.mxu0 0.0
  %909 = vmatpush1.msra.mxu0 0.0
  %910 = vmatprep.subr.mxu0 0.0
  %911 = vmatpush1.msra.mxu0 0.0
  %912 = vmatprep.subr.mxu0 0.0
  %913 = vmatpush1.msra.mxu0 0.0
  %914 = vmatprep.subr.mxu0 0.0
  %915 = vmatpush1.msra.mxu0 0.0
  %916 = vmatprep.subr.mxu0 0.0
  %917 = vmatpush1.msra.mxu0 0.0
  %918 = vmatprep.subr.mxu0 0.0
  %919 = vmatpush1.msra.mxu0 0.0
  %920 = vmatprep.subr.mxu0 0.0
  %921 = vmatpush1.msra.mxu0 0.0
  %922 = vmatprep.subr.mxu0 0.0
  %923 = vmatpush1.msra.mxu0 0.0
  %924 = vmatprep.mubr.f32.mxu0 0.0
  %925 = vmatmul.mubr.f32.gmra.mrb[0].mxu0 %v858
  %v926 = vpop.f32.mrb[0].mxu0
  %v927 = vadd.f32 0.0, %v926
  %v928 = vpop.f32.mrb[0].mxu0
  %929 = vdwg.mxu0
  %v930 = vadd.f32 %v756, %v927
  %v931 = vxor.u32 %v930, 2147483648
  %v932 = vmul.f32 %v931, 1.442695
  %v933 = vpow.pop %v932
  %v934 = vadd.f32 %v933, 1.0
  %v935 = vrcp.pop %v934
  %v936 = vmul.f32 1.0, %v935
  %v937 = vtanh.pop %v930
  %v938 = vmul.f32 %v936, %v675
  %940 = vrot.lane.b32.xlu0 %v937, 116
  %v941 = vpop.permute.xlu0 %940
  %v943 = vmul.f32 %v936, %v941
  %945 = vrot.lane.b32.xlu0 %v943, 6
  %v946 = vpop.permute.xlu0 %945
  %v948 = vadd.f32 %v938, %v946
  %v949 = vtanh.pop %v948
  %951 = vrot.lane.b32.xlu0 %v949, 12
  %v952 = vpop.permute.xlu0 %951
  %v954 = vmul.f32 %v936, %v952
  %956 = vrot.lane.b32.xlu0 %v954, 110
  %v957 = vpop.permute.xlu0 %956
  %959 = vst.msk [vmem:[#allocation3 + $0x4] sm:$0x3] %vm412, %v957
  %v960 = vsel %vm128, %v957, 0
  %962 = vmatprep.subr.mxu0 0.0
  %963 = vmatpush1.msra.mxu0 %v134
  %964 = vmatprep.subr.mxu0 0.0
  %965 = vmatpush1.msra.mxu0 0.0
  %966 = vmatprep.subr.mxu0 0.0
  %967 = vmatpush1.msra.mxu0 0.0
  %968 = vmatprep.subr.mxu0 0.0
  %969 = vmatpush1.msra.mxu0 0.0
  %970 = vmatprep.subr.mxu0 0.0
  %971 = vmatpush1.msra.mxu0 0.0
  %972 = vmatprep.subr.mxu0 0.0
  %973 = vmatpush1.msra.mxu0 0.0
  %974 = vmatprep.subr.mxu0 0.0
  %975 = vmatpush1.msra.mxu0 0.0
  %976 = vmatprep.subr.mxu0 0.0
  %977 = vmatpush1.msra.mxu0 0.0
  %978 = vmatprep.subr.mxu0 0.0
  %979 = vmatpush1.msra.mxu0 0.0
  %980 = vmatprep.subr.mxu0 0.0
  %981 = vmatpush1.msra.mxu0 0.0
  %982 = vmatprep.subr.mxu0 0.0
  %983 = vmatpush1.msra.mxu0 0.0
  %984 = vmatprep.subr.mxu0 0.0
  %985 = vmatpush1.msra.mxu0 0.0
  %986 = vmatprep.subr.mxu0 0.0
  %987 = vmatpush1.msra.mxu0 0.0
  %988 = vmatprep.subr.mxu0 0.0
  %989 = vmatpush1.msra.mxu0 0.0
  %990 = vmatprep.subr.mxu0 0.0
  %991 = vmatpush1.msra.mxu0 0.0
  %992 = vmatprep.subr.mxu0 0.0
  %993 = vmatpush1.msra.mxu0 0.0
  %994 = vmatprep.subr.mxu0 0.0
  %995 = vmatpush1.msra.mxu0 0.0
  %996 = vmatprep.subr.mxu0 0.0
  %997 = vmatpush1.msra.mxu0 0.0
  %998 = vmatprep.subr.mxu0 0.0
  %999 = vmatpush1.msra.mxu0 0.0
  %1000 = vmatprep.subr.mxu0 0.0
  %1001 = vmatpush1.msra.mxu0 0.0
  %1002 = vmatprep.subr.mxu0 0.0
  %1003 = vmatpush1.msra.mxu0 0.0
  %1004 = vmatprep.subr.mxu0 0.0
  %1005 = vmatpush1.msra.mxu0 0.0
  %1006 = vmatprep.subr.mxu0 0.0
  %1007 = vmatpush1.msra.mxu0 0.0
  %1008 = vmatprep.subr.mxu0 0.0
  %1009 = vmatpush1.msra.mxu0 0.0
  %1010 = vmatprep.subr.mxu0 0.0
  %1011 = vmatpush1.msra.mxu0 0.0
  %1012 = vmatprep.subr.mxu0 0.0
  %1013 = vmatpush1.msra.mxu0 0.0
  %1014 = vmatprep.subr.mxu0 0.0
  %1015 = vmatpush1.msra.mxu0 0.0
  %1016 = vmatprep.subr.mxu0 0.0
  %1017 = vmatpush1.msra.mxu0 0.0
  %1018 = vmatprep.subr.mxu0 0.0
  %1019 = vmatpush1.msra.mxu0 0.0
  %1020 = vmatprep.subr.mxu0 0.0
  %1021 = vmatpush1.msra.mxu0 0.0
  %1022 = vmatprep.subr.mxu0 0.0
  %1023 = vmatpush1.msra.mxu0 0.0
  %1024 = vmatprep.subr.mxu0 0.0
  %1025 = vmatpush1.msra.mxu0 0.0
  %1026 = vmatprep.mubr.f32.mxu0 0.0
  %1027 = vmatmul.mubr.f32.gmra.mrb[0].mxu0 %v960
  %v1028 = vpop.f32.mrb[0].mxu0
  %v1029 = vadd.f32 %v127, %v1028
  %v1030 = vpop.f32.mrb[0].mxu0
  %1031 = vdwg.mxu0
  %v1032 = vld [vmem:[#allocation2 + $0x6] sm:$0x3]
  %1033 = vmatprep.subr.mxu0 0.0
  %1034 = vmatpush1.msra.mxu0 %v208
  %1035 = vmatprep.subr.mxu0 0.0
  %1036 = vmatpush1.msra.mxu0 0.0
  %1037 = vmatprep.subr.mxu0 0.0
  %1038 = vmatpush1.msra.mxu0 0.0
  %1039 = vmatprep.subr.mxu0 0.0
  %1040 = vmatpush1.msra.mxu0 0.0
  %1041 = vmatprep.subr.mxu0 0.0
  %1042 = vmatpush1.msra.mxu0 0.0
  %1043 = vmatprep.subr.mxu0 0.0
  %1044 = vmatpush1.msra.mxu0 0.0
  %1045 = vmatprep.subr.mxu0 0.0
  %1046 = vmatpush1.msra.mxu0 0.0
  %1047 = vmatprep.subr.mxu0 0.0
  %1048 = vmatpush1.msra.mxu0 0.0
  %1049 = vmatprep.subr.mxu0 0.0
  %1050 = vmatpush1.msra.mxu0 0.0
  %1051 = vmatprep.subr.mxu0 0.0
  %1052 = vmatpush1.msra.mxu0 0.0
  %1053 = vmatprep.subr.mxu0 0.0
  %1054 = vmatpush1.msra.mxu0 0.0
  %1055 = vmatprep.subr.mxu0 0.0
  %1056 = vmatpush1.msra.mxu0 0.0
  %1057 = vmatprep.subr.mxu0 0.0
  %1058 = vmatpush1.msra.mxu0 0.0
  %1059 = vmatprep.subr.mxu0 0.0
  %1060 = vmatpush1.msra.mxu0 0.0
  %1061 = vmatprep.subr.mxu0 0.0
  %1062 = vmatpush1.msra.mxu0 0.0
  %1063 = vmatprep.subr.mxu0 0.0
  %1064 = vmatpush1.msra.mxu0 0.0
  %1065 = vmatprep.subr.mxu0 0.0
  %1066 = vmatpush1.msra.mxu0 0.0
  %1067 = vmatprep.subr.mxu0 0.0
  %1068 = vmatpush1.msra.mxu0 0.0
  %1069 = vmatprep.subr.mxu0 0.0
  %1070 = vmatpush1.msra.mxu0 0.0
  %1071 = vmatprep.subr.mxu0 0.0
  %1072 = vmatpush1.msra.mxu0 0.0
  %1073 = vmatprep.subr.mxu0 0.0
  %1074 = vmatpush1.msra.mxu0 0.0
  %1075 = vmatprep.subr.mxu0 0.0
  %1076 = vmatpush1.msra.mxu0 0.0
  %1077 = vmatprep.subr.mxu0 0.0
  %1078 = vmatpush1.msra.mxu0 0.0
  %1079 = vmatprep.subr.mxu0 0.0
  %1080 = vmatpush1.msra.mxu0 0.0
  %1081 = vmatprep.subr.mxu0 0.0
  %1082 = vmatpush1.msra.mxu0 0.0
  %1083 = vmatprep.subr.mxu0 0.0
  %1084 = vmatpush1.msra.mxu0 0.0
  %1085 = vmatprep.subr.mxu0 0.0
  %1086 = vmatpush1.msra.mxu0 0.0
  %1087 = vmatprep.subr.mxu0 0.0
  %1088 = vmatpush1.msra.mxu0 0.0
  %1089 = vmatprep.subr.mxu0 0.0
  %1090 = vmatpush1.msra.mxu0 0.0
  %1091 = vmatprep.subr.mxu0 0.0
  %1092 = vmatpush1.msra.mxu0 0.0
  %1093 = vmatprep.subr.mxu0 0.0
  %1094 = vmatpush1.msra.mxu0 0.0
  %1095 = vmatprep.subr.mxu0 0.0
  %1096 = vmatpush1.msra.mxu0 0.0
  %1097 = vmatprep.mubr.f32.mxu0 0.0
  %1098 = vmatmul.mubr.f32.gmra.mrb[0].mxu0 %v858
  %v1099 = vpop.f32.mrb[0].mxu0
  %v1100 = vadd.f32 0.0, %v1099
  %v1101 = vpop.f32.mrb[0].mxu0
  %1102 = vdwg.mxu0
  %v1103 = vadd.f32 %v1032, %v1100
  %v1104 = vxor.u32 %v1103, 2147483648
  %v1105 = vmul.f32 %v1104, 1.442695
  %v1106 = vpow.pop %v1105
  %v1107 = vadd.f32 %v1106, 1.0
  %v1108 = vrcp.pop %v1107
  %v1109 = vmul.f32 1.0, %v1108
  %v1110 = vtanh.pop %v1103
  %v1111 = vmul.f32 %v1109, %v848
  %1113 = vrot.lane.b32.xlu0 %v1110, 116
  %v1114 = vpop.permute.xlu0 %1113
  %v1116 = vmul.f32 %v1109, %v1114
  %1118 = vrot.lane.b32.xlu0 %v1116, 6
  %v1119 = vpop.permute.xlu0 %1118
  %v1121 = vadd.f32 %v1111, %v1119
  %v1122 = vtanh.pop %v1121
  %1124 = vrot.lane.b32.xlu0 %v1122, 12
  %v1125 = vpop.permute.xlu0 %1124
  %v1127 = vmul.f32 %v1109, %v1125
  %1129 = vrot.lane.b32.xlu0 %v1127, 110
  %v1130 = vpop.permute.xlu0 %1129
  %v1131 = vsel %vm128, %v1130, 0
  %1133 = vmatprep.subr.mxu0 0.0
  %1134 = vmatpush1.msra.mxu0 %v311
  %1135 = vmatprep.subr.mxu0 0.0
  %1136 = vmatpush1.msra.mxu0 0.0
  %1137 = vmatprep.subr.mxu0 0.0
  %1138 = vmatpush1.msra.mxu0 0.0
  %1139 = vmatprep.subr.mxu0 0.0
  %1140 = vmatpush1.msra.mxu0 0.0
  %1141 = vmatprep.subr.mxu0 0.0
  %1142 = vmatpush1.msra.mxu0 0.0
  %1143 = vmatprep.subr.mxu0 0.0
  %1144 = vmatpush1.msra.mxu0 0.0
  %1145 = vmatprep.subr.mxu0 0.0
  %1146 = vmatpush1.msra.mxu0 0.0
  %1147 = vmatprep.subr.mxu0 0.0
  %1148 = vmatpush1.msra.mxu0 0.0
  %1149 = vmatprep.subr.mxu0 0.0
  %1150 = vmatpush1.msra.mxu0 0.0
  %1151 = vmatprep.subr.mxu0 0.0
  %1152 = vmatpush1.msra.mxu0 0.0
  %1153 = vmatprep.subr.mxu0 0.0
  %1154 = vmatpush1.msra.mxu0 0.0
  %1155 = vmatprep.subr.mxu0 0.0
  %1156 = vmatpush1.msra.mxu0 0.0
  %1157 = vmatprep.subr.mxu0 0.0
  %1158 = vmatpush1.msra.mxu0 0.0
  %1159 = vmatprep.subr.mxu0 0.0
  %1160 = vmatpush1.msra.mxu0 0.0
  %1161 = vmatprep.subr.mxu0 0.0
  %1162 = vmatpush1.msra.mxu0 0.0
  %1163 = vmatprep.subr.mxu0 0.0
  %1164 = vmatpush1.msra.mxu0 0.0
  %1165 = vmatprep.subr.mxu0 0.0
  %1166 = vmatpush1.msra.mxu0 0.0
  %1167 = vmatprep.subr.mxu0 0.0
  %1168 = vmatpush1.msra.mxu0 0.0
  %1169 = vmatprep.subr.mxu0 0.0
  %1170 = vmatpush1.msra.mxu0 0.0
  %1171 = vmatprep.subr.mxu0 0.0
  %1172 = vmatpush1.msra.mxu0 0.0
  %1173 = vmatprep.subr.mxu0 0.0
  %1174 = vmatpush1.msra.mxu0 0.0
  %1175 = vmatprep.subr.mxu0 0.0
  %1176 = vmatpush1.msra.mxu0 0.0
  %1177 = vmatprep.subr.mxu0 0.0
  %1178 = vmatpush1.msra.mxu0 0.0
  %1179 = vmatprep.subr.mxu0 0.0
  %1180 = vmatpush1.msra.mxu0 0.0
  %1181 = vmatprep.subr.mxu0 0.0
  %1182 = vmatpush1.msra.mxu0 0.0
  %1183 = vmatprep.subr.mxu0 0.0
  %1184 = vmatpush1.msra.mxu0 0.0
  %1185 = vmatprep.subr.mxu0 0.0
  %1186 = vmatpush1.msra.mxu0 0.0
  %1187 = vmatprep.subr.mxu0 0.0
  %1188 = vmatpush1.msra.mxu0 0.0
  %1189 = vmatprep.subr.mxu0 0.0
  %1190 = vmatpush1.msra.mxu0 0.0
  %1191 = vmatprep.subr.mxu0 0.0
  %1192 = vmatpush1.msra.mxu0 0.0
  %1193 = vmatprep.subr.mxu0 0.0
  %1194 = vmatpush1.msra.mxu0 0.0
  %1195 = vmatprep.subr.mxu0 0.0
  %1196 = vmatpush1.msra.mxu0 0.0
  %1197 = vmatprep.mubr.f32.mxu0 0.0
  %1198 = vmatmul.mubr.f32.gmra.mrb[0].mxu0 %v1131
  %v1199 = vpop.f32.mrb[0].mxu0
  %v1200 = vadd.f32 0.0, %v1199
  %v1201 = vpop.f32.mrb[0].mxu0
  %1202 = vdwg.mxu0
  %v1203 = vadd.f32 %v1029, %v1200
  %v1204 = vxor.u32 %v1203, 2147483648
  %v1205 = vmul.f32 %v1204, 1.442695
  %v1206 = vpow.pop %v1205
  %v1207 = vadd.f32 %v1206, 1.0
  %v1208 = vrcp.pop %v1207
  %v1209 = vmul.f32 1.0, %v1208
  %v1210 = vtanh.pop %v1203
  %v1211 = vmul.f32 %v1209, %v948
  %1213 = vrot.lane.b32.xlu0 %v1210, 116
  %v1214 = vpop.permute.xlu0 %1213
  %v1216 = vmul.f32 %v1209, %v1214
  %1218 = vrot.lane.b32.xlu0 %v1216, 6
  %v1219 = vpop.permute.xlu0 %1218
  %v1221 = vadd.f32 %v1211, %v1219
  %v1222 = vtanh.pop %v1221
  %1224 = vrot.lane.b32.xlu0 %v1222, 12
  %v1225 = vpop.permute.xlu0 %1224
  %v1227 = vmul.f32 %v1209, %v1225
  %1229 = vrot.lane.b32.xlu0 %v1227, 110
  %v1230 = vpop.permute.xlu0 %1229
  %1232 = vst.msk [vmem:[#allocation3 + $0x6] sm:$0x3] %vm412, %v1230
  %v1233 = vsel %vm128, %v1230, 0
  %1235 = vmatprep.subr.mxu0 0.0
  %1236 = vmatpush1.msra.mxu0 %v134
  %1237 = vmatprep.subr.mxu0 0.0
  %1238 = vmatpush1.msra.mxu0 0.0
  %1239 = vmatprep.subr.mxu0 0.0
  %1240 = vmatpush1.msra.mxu0 0.0
  %1241 = vmatprep.subr.mxu0 0.0
  %1242 = vmatpush1.msra.mxu0 0.0
  %1243 = vmatprep.subr.mxu0 0.0
  %1244 = vmatpush1.msra.mxu0 0.0
  %1245 = vmatprep.subr.mxu0 0.0
  %1246 = vmatpush1.msra.mxu0 0.0
  %1247 = vmatprep.subr.mxu0 0.0
  %1248 = vmatpush1.msra.mxu0 0.0
  %1249 = vmatprep.subr.mxu0 0.0
  %1250 = vmatpush1.msra.mxu0 0.0
  %1251 = vmatprep.subr.mxu0 0.0
  %1252 = vmatpush1.msra.mxu0 0.0
  %1253 = vmatprep.subr.mxu0 0.0
  %1254 = vmatpush1.msra.mxu0 0.0
  %1255 = vmatprep.subr.mxu0 0.0
  %1256 = vmatpush1.msra.mxu0 0.0
  %1257 = vmatprep.subr.mxu0 0.0
  %1258 = vmatpush1.msra.mxu0 0.0
  %1259 = vmatprep.subr.mxu0 0.0
  %1260 = vmatpush1.msra.mxu0 0.0
  %1261 = vmatprep.subr.mxu0 0.0
  %1262 = vmatpush1.msra.mxu0 0.0
  %1263 = vmatprep.subr.mxu0 0.0
  %1264 = vmatpush1.msra.mxu0 0.0
  %1265 = vmatprep.subr.mxu0 0.0
  %1266 = vmatpush1.msra.mxu0 0.0
  %1267 = vmatprep.subr.mxu0 0.0
  %1268 = vmatpush1.msra.mxu0 0.0
  %1269 = vmatprep.subr.mxu0 0.0
  %1270 = vmatpush1.msra.mxu0 0.0
  %1271 = vmatprep.subr.mxu0 0.0
  %1272 = vmatpush1.msra.mxu0 0.0
  %1273 = vmatprep.subr.mxu0 0.0
  %1274 = vmatpush1.msra.mxu0 0.0
  %1275 = vmatprep.subr.mxu0 0.0
  %1276 = vmatpush1.msra.mxu0 0.0
  %1277 = vmatprep.subr.mxu0 0.0
  %1278 = vmatpush1.msra.mxu0 0.0
  %1279 = vmatprep.subr.mxu0 0.0
  %1280 = vmatpush1.msra.mxu0 0.0
  %1281 = vmatprep.subr.mxu0 0.0
  %1282 = vmatpush1.msra.mxu0 0.0
  %1283 = vmatprep.subr.mxu0 0.0
  %1284 = vmatpush1.msra.mxu0 0.0
  %1285 = vmatprep.subr.mxu0 0.0
  %1286 = vmatpush1.msra.mxu0 0.0
  %1287 = vmatprep.subr.mxu0 0.0
  %1288 = vmatpush1.msra.mxu0 0.0
  %1289 = vmatprep.subr.mxu0 0.0
  %1290 = vmatpush1.msra.mxu0 0.0
  %1291 = vmatprep.subr.mxu0 0.0
  %1292 = vmatpush1.msra.mxu0 0.0
  %1293 = vmatprep.subr.mxu0 0.0
  %1294 = vmatpush1.msra.mxu0 0.0
  %1295 = vmatprep.subr.mxu0 0.0
  %1296 = vmatpush1.msra.mxu0 0.0
  %1297 = vmatprep.subr.mxu0 0.0
  %1298 = vmatpush1.msra.mxu0 0.0
  %1299 = vmatprep.mubr.f32.mxu0 0.0
  %1300 = vmatmul.mubr.f32.gmra.mrb[0].mxu0 %v1233
  %v1301 = vpop.f32.mrb[0].mxu0
  %v1302 = vadd.f32 %v127, %v1301
  %v1303 = vpop.f32.mrb[0].mxu0
  %1304 = vdwg.mxu0
  %v1305 = vld [vmem:[#allocation2 + $0x8] sm:$0x3]
  %1306 = vmatprep.subr.mxu0 0.0
  %1307 = vmatpush1.msra.mxu0 %v208
  %1308 = vmatprep.subr.mxu0 0.0
  %1309 = vmatpush1.msra.mxu0 0.0
  %1310 = vmatprep.subr.mxu0 0.0
  %1311 = vmatpush1.msra.mxu0 0.0
  %1312 = vmatprep.subr.mxu0 0.0
  %1313 = vmatpush1.msra.mxu0 0.0
  %1314 = vmatprep.subr.mxu0 0.0
  %1315 = vmatpush1.msra.mxu0 0.0
  %1316 = vmatprep.subr.mxu0 0.0
  %1317 = vmatpush1.msra.mxu0 0.0
  %1318 = vmatprep.subr.mxu0 0.0
  %1319 = vmatpush1.msra.mxu0 0.0
  %1320 = vmatprep.subr.mxu0 0.0
  %1321 = vmatpush1.msra.mxu0 0.0
  %1322 = vmatprep.subr.mxu0 0.0
  %1323 = vmatpush1.msra.mxu0 0.0
  %1324 = vmatprep.subr.mxu0 0.0
  %1325 = vmatpush1.msra.mxu0 0.0
  %1326 = vmatprep.subr.mxu0 0.0
  %1327 = vmatpush1.msra.mxu0 0.0
  %1328 = vmatprep.subr.mxu0 0.0
  %1329 = vmatpush1.msra.mxu0 0.0
  %1330 = vmatprep.subr.mxu0 0.0
  %1331 = vmatpush1.msra.mxu0 0.0
  %1332 = vmatprep.subr.mxu0 0.0
  %1333 = vmatpush1.msra.mxu0 0.0
  %1334 = vmatprep.subr.mxu0 0.0
  %1335 = vmatpush1.msra.mxu0 0.0
  %1336 = vmatprep.subr.mxu0 0.0
  %1337 = vmatpush1.msra.mxu0 0.0
  %1338 = vmatprep.subr.mxu0 0.0
  %1339 = vmatpush1.msra.mxu0 0.0
  %1340 = vmatprep.subr.mxu0 0.0
  %1341 = vmatpush1.msra.mxu0 0.0
  %1342 = vmatprep.subr.mxu0 0.0
  %1343 = vmatpush1.msra.mxu0 0.0
  %1344 = vmatprep.subr.mxu0 0.0
  %1345 = vmatpush1.msra.mxu0 0.0
  %1346 = vmatprep.subr.mxu0 0.0
  %1347 = vmatpush1.msra.mxu0 0.0
  %1348 = vmatprep.subr.mxu0 0.0
  %1349 = vmatpush1.msra.mxu0 0.0
  %1350 = vmatprep.subr.mxu0 0.0
  %1351 = vmatpush1.msra.mxu0 0.0
  %1352 = vmatprep.subr.mxu0 0.0
  %1353 = vmatpush1.msra.mxu0 0.0
  %1354 = vmatprep.subr.mxu0 0.0
  %1355 = vmatpush1.msra.mxu0 0.0
  %1356 = vmatprep.subr.mxu0 0.0
  %1357 = vmatpush1.msra.mxu0 0.0
  %1358 = vmatprep.subr.mxu0 0.0
  %1359 = vmatpush1.msra.mxu0 0.0
  %1360 = vmatprep.subr.mxu0 0.0
  %1361 = vmatpush1.msra.mxu0 0.0
  %1362 = vmatprep.subr.mxu0 0.0
  %1363 = vmatpush1.msra.mxu0 0.0
  %1364 = vmatprep.subr.mxu0 0.0
  %1365 = vmatpush1.msra.mxu0 0.0
  %1366 = vmatprep.subr.mxu0 0.0
  %1367 = vmatpush1.msra.mxu0 0.0
  %1368 = vmatprep.subr.mxu0 0.0
  %1369 = vmatpush1.msra.mxu0 0.0
  %1370 = vmatprep.mubr.f32.mxu0 0.0
  %1371 = vmatmul.mubr.f32.gmra.mrb[0].mxu0 %v1131
  %v1372 = vpop.f32.mrb[0].mxu0
  %v1373 = vadd.f32 0.0, %v1372
  %v1374 = vpop.f32.mrb[0].mxu0
  %1375 = vdwg.mxu0
  %v1376 = vadd.f32 %v1305, %v1373
  %v1377 = vxor.u32 %v1376, 2147483648
  %v1378 = vmul.f32 %v1377, 1.442695
  %v1379 = vpow.pop %v1378
  %v1380 = vadd.f32 %v1379, 1.0
  %v1381 = vrcp.pop %v1380
  %v1382 = vmul.f32 1.0, %v1381
  %v1383 = vtanh.pop %v1376
  %v1384 = vmul.f32 %v1382, %v1121
  %1386 = vrot.lane.b32.xlu0 %v1383, 116
  %v1387 = vpop.permute.xlu0 %1386
  %v1389 = vmul.f32 %v1382, %v1387
  %1391 = vrot.lane.b32.xlu0 %v1389, 6
  %v1392 = vpop.permute.xlu0 %1391
  %v1394 = vadd.f32 %v1384, %v1392
  %v1395 = vtanh.pop %v1394
  %1397 = vrot.lane.b32.xlu0 %v1395, 12
  %v1398 = vpop.permute.xlu0 %1397
  %v1400 = vmul.f32 %v1382, %v1398
  %1402 = vrot.lane.b32.xlu0 %v1400, 110
  %v1403 = vpop.permute.xlu0 %1402
  %v1404 = vsel %vm128, %v1403, 0
  %1406 = vmatprep.subr.mxu0 0.0
  %1407 = vmatpush1.msra.mxu0 %v311
  %1408 = vmatprep.subr.mxu0 0.0
  %1409 = vmatpush1.msra.mxu0 0.0
  %1410 = vmatprep.subr.mxu0 0.0
  %1411 = vmatpush1.msra.mxu0 0.0
  %1412 = vmatprep.subr.mxu0 0.0
  %1413 = vmatpush1.msra.mxu0 0.0
  %1414 = vmatprep.subr.mxu0 0.0
  %1415 = vmatpush1.msra.mxu0 0.0
  %1416 = vmatprep.subr.mxu0 0.0
  %1417 = vmatpush1.msra.mxu0 0.0
  %1418 = vmatprep.subr.mxu0 0.0
  %1419 = vmatpush1.msra.mxu0 0.0
  %1420 = vmatprep.subr.mxu0 0.0
  %1421 = vmatpush1.msra.mxu0 0.0
  %1422 = vmatprep.subr.mxu0 0.0
  %1423 = vmatpush1.msra.mxu0 0.0
  %1424 = vmatprep.subr.mxu0 0.0
  %1425 = vmatpush1.msra.mxu0 0.0
  %1426 = vmatprep.subr.mxu0 0.0
  %1427 = vmatpush1.msra.mxu0 0.0
  %1428 = vmatprep.subr.mxu0 0.0
  %1429 = vmatpush1.msra.mxu0 0.0
  %1430 = vmatprep.subr.mxu0 0.0
  %1431 = vmatpush1.msra.mxu0 0.0
  %1432 = vmatprep.subr.mxu0 0.0
  %1433 = vmatpush1.msra.mxu0 0.0
  %1434 = vmatprep.subr.mxu0 0.0
  %1435 = vmatpush1.msra.mxu0 0.0
  %1436 = vmatprep.subr.mxu0 0.0
  %1437 = vmatpush1.msra.mxu0 0.0
  %1438 = vmatprep.subr.mxu0 0.0
  %1439 = vmatpush1.msra.mxu0 0.0
  %1440 = vmatprep.subr.mxu0 0.0
  %1441 = vmatpush1.msra.mxu0 0.0
  %1442 = vmatprep.subr.mxu0 0.0
  %1443 = vmatpush1.msra.mxu0 0.0
  %1444 = vmatprep.subr.mxu0 0.0
  %1445 = vmatpush1.msra.mxu0 0.0
  %1446 = vmatprep.subr.mxu0 0.0
  %1447 = vmatpush1.msra.mxu0 0.0
  %1448 = vmatprep.subr.mxu0 0.0
  %1449 = vmatpush1.msra.mxu0 0.0
  %1450 = vmatprep.subr.mxu0 0.0
  %1451 = vmatpush1.msra.mxu0 0.0
  %1452 = vmatprep.subr.mxu0 0.0
  %1453 = vmatpush1.msra.mxu0 0.0
  %1454 = vmatprep.subr.mxu0 0.0
  %1455 = vmatpush1.msra.mxu0 0.0
  %1456 = vmatprep.subr.mxu0 0.0
  %1457 = vmatpush1.msra.mxu0 0.0
  %1458 = vmatprep.subr.mxu0 0.0
  %1459 = vmatpush1.msra.mxu0 0.0
  %1460 = vmatprep.subr.mxu0 0.0
  %1461 = vmatpush1.msra.mxu0 0.0
  %1462 = vmatprep.subr.mxu0 0.0
  %1463 = vmatpush1.msra.mxu0 0.0
  %1464 = vmatprep.subr.mxu0 0.0
  %1465 = vmatpush1.msra.mxu0 0.0
  %1466 = vmatprep.subr.mxu0 0.0
  %1467 = vmatpush1.msra.mxu0 0.0
  %1468 = vmatprep.subr.mxu0 0.0
  %1469 = vmatpush1.msra.mxu0 0.0
  %1470 = vmatprep.mubr.f32.mxu0 0.0
  %1471 = vmatmul.mubr.f32.gmra.mrb[0].mxu0 %v1404
  %v1472 = vpop.f32.mrb[0].mxu0
  %v1473 = vadd.f32 0.0, %v1472
  %v1474 = vpop.f32.mrb[0].mxu0
  %1475 = vdwg.mxu0
  %v1476 = vadd.f32 %v1302, %v1473
  %v1477 = vxor.u32 %v1476, 2147483648
  %v1478 = vmul.f32 %v1477, 1.442695
  %v1479 = vpow.pop %v1478
  %v1480 = vadd.f32 %v1479, 1.0
  %v1481 = vrcp.pop %v1480
  %v1482 = vmul.f32 1.0, %v1481
  %v1483 = vtanh.pop %v1476
  %v1484 = vmul.f32 %v1482, %v1221
  %1486 = vrot.lane.b32.xlu0 %v1483, 116
  %v1487 = vpop.permute.xlu0 %1486
  %v1489 = vmul.f32 %v1482, %v1487
  %1491 = vrot.lane.b32.xlu0 %v1489, 6
  %v1492 = vpop.permute.xlu0 %1491
  %v1494 = vadd.f32 %v1484, %v1492
  %v1495 = vtanh.pop %v1494
  %1497 = vrot.lane.b32.xlu0 %v1495, 12
  %v1498 = vpop.permute.xlu0 %1497
  %v1500 = vmul.f32 %v1482, %v1498
  %1502 = vrot.lane.b32.xlu0 %v1500, 110
  %v1503 = vpop.permute.xlu0 %1502
  %1505 = vst.msk [vmem:[#allocation3 + $0x8] sm:$0x3] %vm412, %v1503
  %v1506 = vsel %vm128, %v1503, 0
  %1508 = vmatprep.subr.mxu0 0.0
  %1509 = vmatpush1.msra.mxu0 %v134
  %1510 = vmatprep.subr.mxu0 0.0
  %1511 = vmatpush1.msra.mxu0 0.0
  %1512 = vmatprep.subr.mxu0 0.0
  %1513 = vmatpush1.msra.mxu0 0.0
  %1514 = vmatprep.subr.mxu0 0.0
  %1515 = vmatpush1.msra.mxu0 0.0
  %1516 = vmatprep.subr.mxu0 0.0
  %1517 = vmatpush1.msra.mxu0 0.0
  %1518 = vmatprep.subr.mxu0 0.0
  %1519 = vmatpush1.msra.mxu0 0.0
  %1520 = vmatprep.subr.mxu0 0.0
  %1521 = vmatpush1.msra.mxu0 0.0
  %1522 = vmatprep.subr.mxu0 0.0
  %1523 = vmatpush1.msra.mxu0 0.0
  %1524 = vmatprep.subr.mxu0 0.0
  %1525 = vmatpush1.msra.mxu0 0.0
  %1526 = vmatprep.subr.mxu0 0.0
  %1527 = vmatpush1.msra.mxu0 0.0
  %1528 = vmatprep.subr.mxu0 0.0
  %1529 = vmatpush1.msra.mxu0 0.0
  %1530 = vmatprep.subr.mxu0 0.0
  %1531 = vmatpush1.msra.mxu0 0.0
  %1532 = vmatprep.subr.mxu0 0.0
  %1533 = vmatpush1.msra.mxu0 0.0
  %1534 = vmatprep.subr.mxu0 0.0
  %1535 = vmatpush1.msra.mxu0 0.0
  %1536 = vmatprep.subr.mxu0 0.0
  %1537 = vmatpush1.msra.mxu0 0.0
  %1538 = vmatprep.subr.mxu0 0.0
  %1539 = vmatpush1.msra.mxu0 0.0
  %1540 = vmatprep.subr.mxu0 0.0
  %1541 = vmatpush1.msra.mxu0 0.0
  %1542 = vmatprep.subr.mxu0 0.0
  %1543 = vmatpush1.msra.mxu0 0.0
  %1544 = vmatprep.subr.mxu0 0.0
  %1545 = vmatpush1.msra.mxu0 0.0
  %1546 = vmatprep.subr.mxu0 0.0
  %1547 = vmatpush1.msra.mxu0 0.0
  %1548 = vmatprep.subr.mxu0 0.0
  %1549 = vmatpush1.msra.mxu0 0.0
  %1550 = vmatprep.subr.mxu0 0.0
  %1551 = vmatpush1.msra.mxu0 0.0
  %1552 = vmatprep.subr.mxu0 0.0
  %1553 = vmatpush1.msra.mxu0 0.0
  %1554 = vmatprep.subr.mxu0 0.0
  %1555 = vmatpush1.msra.mxu0 0.0
  %1556 = vmatprep.subr.mxu0 0.0
  %1557 = vmatpush1.msra.mxu0 0.0
  %1558 = vmatprep.subr.mxu0 0.0
  %1559 = vmatpush1.msra.mxu0 0.0
  %1560 = vmatprep.subr.mxu0 0.0
  %1561 = vmatpush1.msra.mxu0 0.0
  %1562 = vmatprep.subr.mxu0 0.0
  %1563 = vmatpush1.msra.mxu0 0.0
  %1564 = vmatprep.subr.mxu0 0.0
  %1565 = vmatpush1.msra.mxu0 0.0
  %1566 = vmatprep.subr.mxu0 0.0
  %1567 = vmatpush1.msra.mxu0 0.0
  %1568 = vmatprep.subr.mxu0 0.0
  %1569 = vmatpush1.msra.mxu0 0.0
  %1570 = vmatprep.subr.mxu0 0.0
  %1571 = vmatpush1.msra.mxu0 0.0
  %1572 = vmatprep.mubr.f32.mxu0 0.0
  %1573 = vmatmul.mubr.f32.gmra.mrb[0].mxu0 %v1506
  %v1574 = vpop.f32.mrb[0].mxu0
  %v1575 = vadd.f32 %v127, %v1574
  %v1576 = vpop.f32.mrb[0].mxu0
  %1577 = vdwg.mxu0
  %v1578 = vld [vmem:[#allocation2 + $0xa] sm:$0x3]
  %1579 = vmatprep.subr.mxu0 0.0
  %1580 = vmatpush1.msra.mxu0 %v208
  %1581 = vmatprep.subr.mxu0 0.0
  %1582 = vmatpush1.msra.mxu0 0.0
  %1583 = vmatprep.subr.mxu0 0.0
  %1584 = vmatpush1.msra.mxu0 0.0
  %1585 = vmatprep.subr.mxu0 0.0
  %1586 = vmatpush1.msra.mxu0 0.0
  %1587 = vmatprep.subr.mxu0 0.0
  %1588 = vmatpush1.msra.mxu0 0.0
  %1589 = vmatprep.subr.mxu0 0.0
  %1590 = vmatpush1.msra.mxu0 0.0
  %1591 = vmatprep.subr.mxu0 0.0
  %1592 = vmatpush1.msra.mxu0 0.0
  %1593 = vmatprep.subr.mxu0 0.0
  %1594 = vmatpush1.msra.mxu0 0.0
  %1595 = vmatprep.subr.mxu0 0.0
  %1596 = vmatpush1.msra.mxu0 0.0
  %1597 = vmatprep.subr.mxu0 0.0
  %1598 = vmatpush1.msra.mxu0 0.0
  %1599 = vmatprep.subr.mxu0 0.0
  %1600 = vmatpush1.msra.mxu0 0.0
  %1601 = vmatprep.subr.mxu0 0.0
  %1602 = vmatpush1.msra.mxu0 0.0
  %1603 = vmatprep.subr.mxu0 0.0
  %1604 = vmatpush1.msra.mxu0 0.0
  %1605 = vmatprep.subr.mxu0 0.0
  %1606 = vmatpush1.msra.mxu0 0.0
  %1607 = vmatprep.subr.mxu0 0.0
  %1608 = vmatpush1.msra.mxu0 0.0
  %1609 = vmatprep.subr.mxu0 0.0
  %1610 = vmatpush1.msra.mxu0 0.0
  %1611 = vmatprep.subr.mxu0 0.0
  %1612 = vmatpush1.msra.mxu0 0.0
  %1613 = vmatprep.subr.mxu0 0.0
  %1614 = vmatpush1.msra.mxu0 0.0
  %1615 = vmatprep.subr.mxu0 0.0
  %1616 = vmatpush1.msra.mxu0 0.0
  %1617 = vmatprep.subr.mxu0 0.0
  %1618 = vmatpush1.msra.mxu0 0.0
  %1619 = vmatprep.subr.mxu0 0.0
  %1620 = vmatpush1.msra.mxu0 0.0
  %1621 = vmatprep.subr.mxu0 0.0
  %1622 = vmatpush1.msra.mxu0 0.0
  %1623 = vmatprep.subr.mxu0 0.0
  %1624 = vmatpush1.msra.mxu0 0.0
  %1625 = vmatprep.subr.mxu0 0.0
  %1626 = vmatpush1.msra.mxu0 0.0
  %1627 = vmatprep.subr.mxu0 0.0
  %1628 = vmatpush1.msra.mxu0 0.0
  %1629 = vmatprep.subr.mxu0 0.0
  %1630 = vmatpush1.msra.mxu0 0.0
  %1631 = vmatprep.subr.mxu0 0.0
  %1632 = vmatpush1.msra.mxu0 0.0
  %1633 = vmatprep.subr.mxu0 0.0
  %1634 = vmatpush1.msra.mxu0 0.0
  %1635 = vmatprep.subr.mxu0 0.0
  %1636 = vmatpush1.msra.mxu0 0.0
  %1637 = vmatprep.subr.mxu0 0.0
  %1638 = vmatpush1.msra.mxu0 0.0
  %1639 = vmatprep.subr.mxu0 0.0
  %1640 = vmatpush1.msra.mxu0 0.0
  %1641 = vmatprep.subr.mxu0 0.0
  %1642 = vmatpush1.msra.mxu0 0.0
  %1643 = vmatprep.mubr.f32.mxu0 0.0
  %1644 = vmatmul.mubr.f32.gmra.mrb[0].mxu0 %v1404
  %v1645 = vpop.f32.mrb[0].mxu0
  %v1646 = vadd.f32 0.0, %v1645
  %v1647 = vpop.f32.mrb[0].mxu0
  %1648 = vdwg.mxu0
  %v1649 = vadd.f32 %v1578, %v1646
  %v1650 = vxor.u32 %v1649, 2147483648
  %v1651 = vmul.f32 %v1650, 1.442695
  %v1652 = vpow.pop %v1651
  %v1653 = vadd.f32 %v1652, 1.0
  %v1654 = vrcp.pop %v1653
  %v1655 = vmul.f32 1.0, %v1654
  %v1656 = vtanh.pop %v1649
  %v1657 = vmul.f32 %v1655, %v1394
  %1659 = vrot.lane.b32.xlu0 %v1656, 116
  %v1660 = vpop.permute.xlu0 %1659
  %v1662 = vmul.f32 %v1655, %v1660
  %1664 = vrot.lane.b32.xlu0 %v1662, 6
  %v1665 = vpop.permute.xlu0 %1664
  %v1667 = vadd.f32 %v1657, %v1665
  %v1668 = vtanh.pop %v1667
  %1670 = vrot.lane.b32.xlu0 %v1668, 12
  %v1671 = vpop.permute.xlu0 %1670
  %v1673 = vmul.f32 %v1655, %v1671
  %1675 = vrot.lane.b32.xlu0 %v1673, 110
  %v1676 = vpop.permute.xlu0 %1675
  %v1677 = vsel %vm128, %v1676, 0
  %1679 = vmatprep.subr.mxu0 0.0
  %1680 = vmatpush1.msra.mxu0 %v311
  %1681 = vmatprep.subr.mxu0 0.0
  %1682 = vmatpush1.msra.mxu0 0.0
  %1683 = vmatprep.subr.mxu0 0.0
  %1684 = vmatpush1.msra.mxu0 0.0
  %1685 = vmatprep.subr.mxu0 0.0
  %1686 = vmatpush1.msra.mxu0 0.0
  %1687 = vmatprep.subr.mxu0 0.0
  %1688 = vmatpush1.msra.mxu0 0.0
  %1689 = vmatprep.subr.mxu0 0.0
  %1690 = vmatpush1.msra.mxu0 0.0
  %1691 = vmatprep.subr.mxu0 0.0
  %1692 = vmatpush1.msra.mxu0 0.0
  %1693 = vmatprep.subr.mxu0 0.0
  %1694 = vmatpush1.msra.mxu0 0.0
  %1695 = vmatprep.subr.mxu0 0.0
  %1696 = vmatpush1.msra.mxu0 0.0
  %1697 = vmatprep.subr.mxu0 0.0
  %1698 = vmatpush1.msra.mxu0 0.0
  %1699 = vmatprep.subr.mxu0 0.0
  %1700 = vmatpush1.msra.mxu0 0.0
  %1701 = vmatprep.subr.mxu0 0.0
  %1702 = vmatpush1.msra.mxu0 0.0
  %1703 = vmatprep.subr.mxu0 0.0
  %1704 = vmatpush1.msra.mxu0 0.0
  %1705 = vmatprep.subr.mxu0 0.0
  %1706 = vmatpush1.msra.mxu0 0.0
  %1707 = vmatprep.subr.mxu0 0.0
  %1708 = vmatpush1.msra.mxu0 0.0
  %1709 = vmatprep.subr.mxu0 0.0
  %1710 = vmatpush1.msra.mxu0 0.0
  %1711 = vmatprep.subr.mxu0 0.0
  %1712 = vmatpush1.msra.mxu0 0.0
  %1713 = vmatprep.subr.mxu0 0.0
  %1714 = vmatpush1.msra.mxu0 0.0
  %1715 = vmatprep.subr.mxu0 0.0
  %1716 = vmatpush1.msra.mxu0 0.0
  %1717 = vmatprep.subr.mxu0 0.0
  %1718 = vmatpush1.msra.mxu0 0.0
  %1719 = vmatprep.subr.mxu0 0.0
  %1720 = vmatpush1.msra.mxu0 0.0
  %1721 = vmatprep.subr.mxu0 0.0
  %1722 = vmatpush1.msra.mxu0 0.0
  %1723 = vmatprep.subr.mxu0 0.0
  %1724 = vmatpush1.msra.mxu0 0.0
  %1725 = vmatprep.subr.mxu0 0.0
  %1726 = vmatpush1.msra.mxu0 0.0
  %1727 = vmatprep.subr.mxu0 0.0
  %1728 = vmatpush1.msra.mxu0 0.0
  %1729 = vmatprep.subr.mxu0 0.0
  %1730 = vmatpush1.msra.mxu0 0.0
  %1731 = vmatprep.subr.mxu0 0.0
  %1732 = vmatpush1.msra.mxu0 0.0
  %1733 = vmatprep.subr.mxu0 0.0
  %1734 = vmatpush1.msra.mxu0 0.0
  %1735 = vmatprep.subr.mxu0 0.0
  %1736 = vmatpush1.msra.mxu0 0.0
  %1737 = vmatprep.subr.mxu0 0.0
  %1738 = vmatpush1.msra.mxu0 0.0
  %1739 = vmatprep.subr.mxu0 0.0
  %1740 = vmatpush1.msra.mxu0 0.0
  %1741 = vmatprep.subr.mxu0 0.0
  %1742 = vmatpush1.msra.mxu0 0.0
  %1743 = vmatprep.mubr.f32.mxu0 0.0
  %1744 = vmatmul.mubr.f32.gmra.mrb[0].mxu0 %v1677
  %v1745 = vpop.f32.mrb[0].mxu0
  %v1746 = vadd.f32 0.0, %v1745
  %v1747 = vpop.f32.mrb[0].mxu0
  %1748 = vdwg.mxu0
  %v1749 = vadd.f32 %v1575, %v1746
  %v1750 = vxor.u32 %v1749, 2147483648
  %v1751 = vmul.f32 %v1750, 1.442695
  %v1752 = vpow.pop %v1751
  %v1753 = vadd.f32 %v1752, 1.0
  %v1754 = vrcp.pop %v1753
  %v1755 = vmul.f32 1.0, %v1754
  %v1756 = vtanh.pop %v1749
  %v1757 = vmul.f32 %v1755, %v1494
  %1759 = vrot.lane.b32.xlu0 %v1756, 116
  %v1760 = vpop.permute.xlu0 %1759
  %v1762 = vmul.f32 %v1755, %v1760
  %1764 = vrot.lane.b32.xlu0 %v1762, 6
  %v1765 = vpop.permute.xlu0 %1764
  %v1767 = vadd.f32 %v1757, %v1765
  %v1768 = vtanh.pop %v1767
  %1770 = vrot.lane.b32.xlu0 %v1768, 12
  %v1771 = vpop.permute.xlu0 %1770
  %v1773 = vmul.f32 %v1755, %v1771
  %1775 = vrot.lane.b32.xlu0 %v1773, 110
  %v1776 = vpop.permute.xlu0 %1775
  %1778 = vst.msk [vmem:[#allocation3 + $0xa] sm:$0x3] %vm412, %v1776
  %v1779 = vsel %vm128, %v1776, 0
  %1781 = vmatprep.subr.mxu0 0.0
  %1782 = vmatpush1.msra.mxu0 %v134
  %1783 = vmatprep.subr.mxu0 0.0
  %1784 = vmatpush1.msra.mxu0 0.0
  %1785 = vmatprep.subr.mxu0 0.0
  %1786 = vmatpush1.msra.mxu0 0.0
  %1787 = vmatprep.subr.mxu0 0.0
  %1788 = vmatpush1.msra.mxu0 0.0
  %1789 = vmatprep.subr.mxu0 0.0
  %1790 = vmatpush1.msra.mxu0 0.0
  %1791 = vmatprep.subr.mxu0 0.0
  %1792 = vmatpush1.msra.mxu0 0.0
  %1793 = vmatprep.subr.mxu0 0.0
  %1794 = vmatpush1.msra.mxu0 0.0
  %1795 = vmatprep.subr.mxu0 0.0
  %1796 = vmatpush1.msra.mxu0 0.0
  %1797 = vmatprep.subr.mxu0 0.0
  %1798 = vmatpush1.msra.mxu0 0.0
  %1799 = vmatprep.subr.mxu0 0.0
  %1800 = vmatpush1.msra.mxu0 0.0
  %1801 = vmatprep.subr.mxu0 0.0
  %1802 = vmatpush1.msra.mxu0 0.0
  %1803 = vmatprep.subr.mxu0 0.0
  %1804 = vmatpush1.msra.mxu0 0.0
  %1805 = vmatprep.subr.mxu0 0.0
  %1806 = vmatpush1.msra.mxu0 0.0
  %1807 = vmatprep.subr.mxu0 0.0
  %1808 = vmatpush1.msra.mxu0 0.0
  %1809 = vmatprep.subr.mxu0 0.0
  %1810 = vmatpush1.msra.mxu0 0.0
  %1811 = vmatprep.subr.mxu0 0.0
  %1812 = vmatpush1.msra.mxu0 0.0
  %1813 = vmatprep.subr.mxu0 0.0
  %1814 = vmatpush1.msra.mxu0 0.0
  %1815 = vmatprep.subr.mxu0 0.0
  %1816 = vmatpush1.msra.mxu0 0.0
  %1817 = vmatprep.subr.mxu0 0.0
  %1818 = vmatpush1.msra.mxu0 0.0
  %1819 = vmatprep.subr.mxu0 0.0
  %1820 = vmatpush1.msra.mxu0 0.0
  %1821 = vmatprep.subr.mxu0 0.0
  %1822 = vmatpush1.msra.mxu0 0.0
  %1823 = vmatprep.subr.mxu0 0.0
  %1824 = vmatpush1.msra.mxu0 0.0
  %1825 = vmatprep.subr.mxu0 0.0
  %1826 = vmatpush1.msra.mxu0 0.0
  %1827 = vmatprep.subr.mxu0 0.0
  %1828 = vmatpush1.msra.mxu0 0.0
  %1829 = vmatprep.subr.mxu0 0.0
  %1830 = vmatpush1.msra.mxu0 0.0
  %1831 = vmatprep.subr.mxu0 0.0
  %1832 = vmatpush1.msra.mxu0 0.0
  %1833 = vmatprep.subr.mxu0 0.0
  %1834 = vmatpush1.msra.mxu0 0.0
  %1835 = vmatprep.subr.mxu0 0.0
  %1836 = vmatpush1.msra.mxu0 0.0
  %1837 = vmatprep.subr.mxu0 0.0
  %1838 = vmatpush1.msra.mxu0 0.0
  %1839 = vmatprep.subr.mxu0 0.0
  %1840 = vmatpush1.msra.mxu0 0.0
  %1841 = vmatprep.subr.mxu0 0.0
  %1842 = vmatpush1.msra.mxu0 0.0
  %1843 = vmatprep.subr.mxu0 0.0
  %1844 = vmatpush1.msra.mxu0 0.0
  %1845 = vmatprep.mubr.f32.mxu0 0.0
  %1846 = vmatmul.mubr.f32.gmra.mrb[0].mxu0 %v1779
  %v1847 = vpop.f32.mrb[0].mxu0
  %v1848 = vadd.f32 %v127, %v1847
  %v1849 = vpop.f32.mrb[0].mxu0
  %1850 = vdwg.mxu0
  %v1851 = vld [vmem:[#allocation2 + $0xc] sm:$0x3]
  %1852 = vmatprep.subr.mxu0 0.0
  %1853 = vmatpush1.msra.mxu0 %v208
  %1854 = vmatprep.subr.mxu0 0.0
  %1855 = vmatpush1.msra.mxu0 0.0
  %1856 = vmatprep.subr.mxu0 0.0
  %1857 = vmatpush1.msra.mxu0 0.0
  %1858 = vmatprep.subr.mxu0 0.0
  %1859 = vmatpush1.msra.mxu0 0.0
  %1860 = vmatprep.subr.mxu0 0.0
  %1861 = vmatpush1.msra.mxu0 0.0
  %1862 = vmatprep.subr.mxu0 0.0
  %1863 = vmatpush1.msra.mxu0 0.0
  %1864 = vmatprep.subr.mxu0 0.0
  %1865 = vmatpush1.msra.mxu0 0.0
  %1866 = vmatprep.subr.mxu0 0.0
  %1867 = vmatpush1.msra.mxu0 0.0
  %1868 = vmatprep.subr.mxu0 0.0
  %1869 = vmatpush1.msra.mxu0 0.0
  %1870 = vmatprep.subr.mxu0 0.0
  %1871 = vmatpush1.msra.mxu0 0.0
  %1872 = vmatprep.subr.mxu0 0.0
  %1873 = vmatpush1.msra.mxu0 0.0
  %1874 = vmatprep.subr.mxu0 0.0
  %1875 = vmatpush1.msra.mxu0 0.0
  %1876 = vmatprep.subr.mxu0 0.0
  %1877 = vmatpush1.msra.mxu0 0.0
  %1878 = vmatprep.subr.mxu0 0.0
  %1879 = vmatpush1.msra.mxu0 0.0
  %1880 = vmatprep.subr.mxu0 0.0
  %1881 = vmatpush1.msra.mxu0 0.0
  %1882 = vmatprep.subr.mxu0 0.0
  %1883 = vmatpush1.msra.mxu0 0.0
  %1884 = vmatprep.subr.mxu0 0.0
  %1885 = vmatpush1.msra.mxu0 0.0
  %1886 = vmatprep.subr.mxu0 0.0
  %1887 = vmatpush1.msra.mxu0 0.0
  %1888 = vmatprep.subr.mxu0 0.0
  %1889 = vmatpush1.msra.mxu0 0.0
  %1890 = vmatprep.subr.mxu0 0.0
  %1891 = vmatpush1.msra.mxu0 0.0
  %1892 = vmatprep.subr.mxu0 0.0
  %1893 = vmatpush1.msra.mxu0 0.0
  %1894 = vmatprep.subr.mxu0 0.0
  %1895 = vmatpush1.msra.mxu0 0.0
  %1896 = vmatprep.subr.mxu0 0.0
  %1897 = vmatpush1.msra.mxu0 0.0
  %1898 = vmatprep.subr.mxu0 0.0
  %1899 = vmatpush1.msra.mxu0 0.0
  %1900 = vmatprep.subr.mxu0 0.0
  %1901 = vmatpush1.msra.mxu0 0.0
  %1902 = vmatprep.subr.mxu0 0.0
  %1903 = vmatpush1.msra.mxu0 0.0
  %1904 = vmatprep.subr.mxu0 0.0
  %1905 = vmatpush1.msra.mxu0 0.0
  %1906 = vmatprep.subr.mxu0 0.0
  %1907 = vmatpush1.msra.mxu0 0.0
  %1908 = vmatprep.subr.mxu0 0.0
  %1909 = vmatpush1.msra.mxu0 0.0
  %1910 = vmatprep.subr.mxu0 0.0
  %1911 = vmatpush1.msra.mxu0 0.0
  %1912 = vmatprep.subr.mxu0 0.0
  %1913 = vmatpush1.msra.mxu0 0.0
  %1914 = vmatprep.subr.mxu0 0.0
  %1915 = vmatpush1.msra.mxu0 0.0
  %1916 = vmatprep.mubr.f32.mxu0 0.0
  %1917 = vmatmul.mubr.f32.gmra.mrb[0].mxu0 %v1677
  %v1918 = vpop.f32.mrb[0].mxu0
  %v1919 = vadd.f32 0.0, %v1918
  %v1920 = vpop.f32.mrb[0].mxu0
  %1921 = vdwg.mxu0
  %v1922 = vadd.f32 %v1851, %v1919
  %v1923 = vxor.u32 %v1922, 2147483648
  %v1924 = vmul.f32 %v1923, 1.442695
  %v1925 = vpow.pop %v1924
  %v1926 = vadd.f32 %v1925, 1.0
  %v1927 = vrcp.pop %v1926
  %v1928 = vmul.f32 1.0, %v1927
  %v1929 = vtanh.pop %v1922
  %v1930 = vmul.f32 %v1928, %v1667
  %1932 = vrot.lane.b32.xlu0 %v1929, 116
  %v1933 = vpop.permute.xlu0 %1932
  %v1935 = vmul.f32 %v1928, %v1933
  %1937 = vrot.lane.b32.xlu0 %v1935, 6
  %v1938 = vpop.permute.xlu0 %1937
  %v1940 = vadd.f32 %v1930, %v1938
  %v1941 = vtanh.pop %v1940
  %1943 = vrot.lane.b32.xlu0 %v1941, 12
  %v1944 = vpop.permute.xlu0 %1943
  %v1946 = vmul.f32 %v1928, %v1944
  %1948 = vrot.lane.b32.xlu0 %v1946, 110
  %v1949 = vpop.permute.xlu0 %1948
  %v1950 = vsel %vm128, %v1949, 0
  %1952 = vmatprep.subr.mxu0 0.0
  %1953 = vmatpush1.msra.mxu0 %v311
  %1954 = vmatprep.subr.mxu0 0.0
  %1955 = vmatpush1.msra.mxu0 0.0
  %1956 = vmatprep.subr.mxu0 0.0
  %1957 = vmatpush1.msra.mxu0 0.0
  %1958 = vmatprep.subr.mxu0 0.0
  %1959 = vmatpush1.msra.mxu0 0.0
  %1960 = vmatprep.subr.mxu0 0.0
  %1961 = vmatpush1.msra.mxu0 0.0
  %1962 = vmatprep.subr.mxu0 0.0
  %1963 = vmatpush1.msra.mxu0 0.0
  %1964 = vmatprep.subr.mxu0 0.0
  %1965 = vmatpush1.msra.mxu0 0.0
  %1966 = vmatprep.subr.mxu0 0.0
  %1967 = vmatpush1.msra.mxu0 0.0
  %1968 = vmatprep.subr.mxu0 0.0
  %1969 = vmatpush1.msra.mxu0 0.0
  %1970 = vmatprep.subr.mxu0 0.0
  %1971 = vmatpush1.msra.mxu0 0.0
  %1972 = vmatprep.subr.mxu0 0.0
  %1973 = vmatpush1.msra.mxu0 0.0
  %1974 = vmatprep.subr.mxu0 0.0
  %1975 = vmatpush1.msra.mxu0 0.0
  %1976 = vmatprep.subr.mxu0 0.0
  %1977 = vmatpush1.msra.mxu0 0.0
  %1978 = vmatprep.subr.mxu0 0.0
  %1979 = vmatpush1.msra.mxu0 0.0
  %1980 = vmatprep.subr.mxu0 0.0
  %1981 = vmatpush1.msra.mxu0 0.0
  %1982 = vmatprep.subr.mxu0 0.0
  %1983 = vmatpush1.msra.mxu0 0.0
  %1984 = vmatprep.subr.mxu0 0.0
  %1985 = vmatpush1.msra.mxu0 0.0
  %1986 = vmatprep.subr.mxu0 0.0
  %1987 = vmatpush1.msra.mxu0 0.0
  %1988 = vmatprep.subr.mxu0 0.0
  %1989 = vmatpush1.msra.mxu0 0.0
  %1990 = vmatprep.subr.mxu0 0.0
  %1991 = vmatpush1.msra.mxu0 0.0
  %1992 = vmatprep.subr.mxu0 0.0
  %1993 = vmatpush1.msra.mxu0 0.0
  %1994 = vmatprep.subr.mxu0 0.0
  %1995 = vmatpush1.msra.mxu0 0.0
  %1996 = vmatprep.subr.mxu0 0.0
  %1997 = vmatpush1.msra.mxu0 0.0
  %1998 = vmatprep.subr.mxu0 0.0
  %1999 = vmatpush1.msra.mxu0 0.0
  %2000 = vmatprep.subr.mxu0 0.0
  %2001 = vmatpush1.msra.mxu0 0.0
  %2002 = vmatprep.subr.mxu0 0.0
  %2003 = vmatpush1.msra.mxu0 0.0
  %2004 = vmatprep.subr.mxu0 0.0
  %2005 = vmatpush1.msra.mxu0 0.0
  %2006 = vmatprep.subr.mxu0 0.0
  %2007 = vmatpush1.msra.mxu0 0.0
  %2008 = vmatprep.subr.mxu0 0.0
  %2009 = vmatpush1.msra.mxu0 0.0
  %2010 = vmatprep.subr.mxu0 0.0
  %2011 = vmatpush1.msra.mxu0 0.0
  %2012 = vmatprep.subr.mxu0 0.0
  %2013 = vmatpush1.msra.mxu0 0.0
  %2014 = vmatprep.subr.mxu0 0.0
  %2015 = vmatpush1.msra.mxu0 0.0
  %2016 = vmatprep.mubr.f32.mxu0 0.0
  %2017 = vmatmul.mubr.f32.gmra.mrb[0].mxu0 %v1950
  %v2018 = vpop.f32.mrb[0].mxu0
  %v2019 = vadd.f32 0.0, %v2018
  %v2020 = vpop.f32.mrb[0].mxu0
  %2021 = vdwg.mxu0
  %v2022 = vadd.f32 %v1848, %v2019
  %v2023 = vxor.u32 %v2022, 2147483648
  %v2024 = vmul.f32 %v2023, 1.442695
  %v2025 = vpow.pop %v2024
  %v2026 = vadd.f32 %v2025, 1.0
  %v2027 = vrcp.pop %v2026
  %v2028 = vmul.f32 1.0, %v2027
  %v2029 = vtanh.pop %v2022
  %v2030 = vmul.f32 %v2028, %v1767
  %2032 = vrot.lane.b32.xlu0 %v2029, 116
  %v2033 = vpop.permute.xlu0 %2032
  %v2035 = vmul.f32 %v2028, %v2033
  %2037 = vrot.lane.b32.xlu0 %v2035, 6
  %v2038 = vpop.permute.xlu0 %2037
  %v2040 = vadd.f32 %v2030, %v2038
  %v2041 = vtanh.pop %v2040
  %2043 = vrot.lane.b32.xlu0 %v2041, 12
  %v2044 = vpop.permute.xlu0 %2043
  %v2046 = vmul.f32 %v2028, %v2044
  %2048 = vrot.lane.b32.xlu0 %v2046, 110
  %v2049 = vpop.permute.xlu0 %2048
  %2051 = vst.msk [vmem:[#allocation3 + $0xc] sm:$0x3] %vm412, %v2049
  %v2052 = vsel %vm128, %v2049, 0
  %2054 = vmatprep.subr.mxu0 0.0
  %2055 = vmatpush1.msra.mxu0 %v134
  %2056 = vmatprep.subr.mxu0 0.0
  %2057 = vmatpush1.msra.mxu0 0.0
  %2058 = vmatprep.subr.mxu0 0.0
  %2059 = vmatpush1.msra.mxu0 0.0
  %2060 = vmatprep.subr.mxu0 0.0
  %2061 = vmatpush1.msra.mxu0 0.0
  %2062 = vmatprep.subr.mxu0 0.0
  %2063 = vmatpush1.msra.mxu0 0.0
  %2064 = vmatprep.subr.mxu0 0.0
  %2065 = vmatpush1.msra.mxu0 0.0
  %2066 = vmatprep.subr.mxu0 0.0
  %2067 = vmatpush1.msra.mxu0 0.0
  %2068 = vmatprep.subr.mxu0 0.0
  %2069 = vmatpush1.msra.mxu0 0.0
  %2070 = vmatprep.subr.mxu0 0.0
  %2071 = vmatpush1.msra.mxu0 0.0
  %2072 = vmatprep.subr.mxu0 0.0
  %2073 = vmatpush1.msra.mxu0 0.0
  %2074 = vmatprep.subr.mxu0 0.0
  %2075 = vmatpush1.msra.mxu0 0.0
  %2076 = vmatprep.subr.mxu0 0.0
  %2077 = vmatpush1.msra.mxu0 0.0
  %2078 = vmatprep.subr.mxu0 0.0
  %2079 = vmatpush1.msra.mxu0 0.0
  %2080 = vmatprep.subr.mxu0 0.0
  %2081 = vmatpush1.msra.mxu0 0.0
  %2082 = vmatprep.subr.mxu0 0.0
  %2083 = vmatpush1.msra.mxu0 0.0
  %2084 = vmatprep.subr.mxu0 0.0
  %2085 = vmatpush1.msra.mxu0 0.0
  %2086 = vmatprep.subr.mxu0 0.0
  %2087 = vmatpush1.msra.mxu0 0.0
  %2088 = vmatprep.subr.mxu0 0.0
  %2089 = vmatpush1.msra.mxu0 0.0
  %2090 = vmatprep.subr.mxu0 0.0
  %2091 = vmatpush1.msra.mxu0 0.0
  %2092 = vmatprep.subr.mxu0 0.0
  %2093 = vmatpush1.msra.mxu0 0.0
  %2094 = vmatprep.subr.mxu0 0.0
  %2095 = vmatpush1.msra.mxu0 0.0
  %2096 = vmatprep.subr.mxu0 0.0
  %2097 = vmatpush1.msra.mxu0 0.0
  %2098 = vmatprep.subr.mxu0 0.0
  %2099 = vmatpush1.msra.mxu0 0.0
  %2100 = vmatprep.subr.mxu0 0.0
  %2101 = vmatpush1.msra.mxu0 0.0
  %2102 = vmatprep.subr.mxu0 0.0
  %2103 = vmatpush1.msra.mxu0 0.0
  %2104 = vmatprep.subr.mxu0 0.0
  %2105 = vmatpush1.msra.mxu0 0.0
  %2106 = vmatprep.subr.mxu0 0.0
  %2107 = vmatpush1.msra.mxu0 0.0
  %2108 = vmatprep.subr.mxu0 0.0
  %2109 = vmatpush1.msra.mxu0 0.0
  %2110 = vmatprep.subr.mxu0 0.0
  %2111 = vmatpush1.msra.mxu0 0.0
  %2112 = vmatprep.subr.mxu0 0.0
  %2113 = vmatpush1.msra.mxu0 0.0
  %2114 = vmatprep.subr.mxu0 0.0
  %2115 = vmatpush1.msra.mxu0 0.0
  %2116 = vmatprep.subr.mxu0 0.0
  %2117 = vmatpush1.msra.mxu0 0.0
  %2118 = vmatprep.mubr.f32.mxu0 0.0
  %2119 = vmatmul.mubr.f32.gmra.mrb[0].mxu0 %v2052
  %v2120 = vpop.f32.mrb[0].mxu0
  %v2121 = vadd.f32 %v127, %v2120
  %v2122 = vpop.f32.mrb[0].mxu0
  %2123 = vdwg.mxu0
  %v2124 = vld [vmem:[#allocation2 + $0xe] sm:$0x3]
  %2125 = vmatprep.subr.mxu0 0.0
  %2126 = vmatpush1.msra.mxu0 %v208
  %2127 = vmatprep.subr.mxu0 0.0
  %2128 = vmatpush1.msra.mxu0 0.0
  %2129 = vmatprep.subr.mxu0 0.0
  %2130 = vmatpush1.msra.mxu0 0.0
  %2131 = vmatprep.subr.mxu0 0.0
  %2132 = vmatpush1.msra.mxu0 0.0
  %2133 = vmatprep.subr.mxu0 0.0
  %2134 = vmatpush1.msra.mxu0 0.0
  %2135 = vmatprep.subr.mxu0 0.0
  %2136 = vmatpush1.msra.mxu0 0.0
  %2137 = vmatprep.subr.mxu0 0.0
  %2138 = vmatpush1.msra.mxu0 0.0
  %2139 = vmatprep.subr.mxu0 0.0
  %2140 = vmatpush1.msra.mxu0 0.0
  %2141 = vmatprep.subr.mxu0 0.0
  %2142 = vmatpush1.msra.mxu0 0.0
  %2143 = vmatprep.subr.mxu0 0.0
  %2144 = vmatpush1.msra.mxu0 0.0
  %2145 = vmatprep.subr.mxu0 0.0
  %2146 = vmatpush1.msra.mxu0 0.0
  %2147 = vmatprep.subr.mxu0 0.0
  %2148 = vmatpush1.msra.mxu0 0.0
  %2149 = vmatprep.subr.mxu0 0.0
  %2150 = vmatpush1.msra.mxu0 0.0
  %2151 = vmatprep.subr.mxu0 0.0
  %2152 = vmatpush1.msra.mxu0 0.0
  %2153 = vmatprep.subr.mxu0 0.0
  %2154 = vmatpush1.msra.mxu0 0.0
  %2155 = vmatprep.subr.mxu0 0.0
  %2156 = vmatpush1.msra.mxu0 0.0
  %2157 = vmatprep.subr.mxu0 0.0
  %2158 = vmatpush1.msra.mxu0 0.0
  %2159 = vmatprep.subr.mxu0 0.0
  %2160 = vmatpush1.msra.mxu0 0.0
  %2161 = vmatprep.subr.mxu0 0.0
  %2162 = vmatpush1.msra.mxu0 0.0
  %2163 = vmatprep.subr.mxu0 0.0
  %2164 = vmatpush1.msra.mxu0 0.0
  %2165 = vmatprep.subr.mxu0 0.0
  %2166 = vmatpush1.msra.mxu0 0.0
  %2167 = vmatprep.subr.mxu0 0.0
  %2168 = vmatpush1.msra.mxu0 0.0
  %2169 = vmatprep.subr.mxu0 0.0
  %2170 = vmatpush1.msra.mxu0 0.0
  %2171 = vmatprep.subr.mxu0 0.0
  %2172 = vmatpush1.msra.mxu0 0.0
  %2173 = vmatprep.subr.mxu0 0.0
  %2174 = vmatpush1.msra.mxu0 0.0
  %2175 = vmatprep.subr.mxu0 0.0
  %2176 = vmatpush1.msra.mxu0 0.0
  %2177 = vmatprep.subr.mxu0 0.0
  %2178 = vmatpush1.msra.mxu0 0.0
  %2179 = vmatprep.subr.mxu0 0.0
  %2180 = vmatpush1.msra.mxu0 0.0
  %2181 = vmatprep.subr.mxu0 0.0
  %2182 = vmatpush1.msra.mxu0 0.0
  %2183 = vmatprep.subr.mxu0 0.0
  %2184 = vmatpush1.msra.mxu0 0.0
  %2185 = vmatprep.subr.mxu0 0.0
  %2186 = vmatpush1.msra.mxu0 0.0
  %2187 = vmatprep.subr.mxu0 0.0
  %2188 = vmatpush1.msra.mxu0 0.0
  %2189 = vmatprep.mubr.f32.mxu0 0.0
  %2190 = vmatmul.mubr.f32.gmra.mrb[0].mxu0 %v1950
  %v2191 = vpop.f32.mrb[0].mxu0
  %v2192 = vadd.f32 0.0, %v2191
  %v2193 = vpop.f32.mrb[0].mxu0
  %2194 = vdwg.mxu0
  %v2195 = vadd.f32 %v2124, %v2192
  %v2196 = vxor.u32 %v2195, 2147483648
  %v2197 = vmul.f32 %v2196, 1.442695
  %v2198 = vpow.pop %v2197
  %v2199 = vadd.f32 %v2198, 1.0
  %v2200 = vrcp.pop %v2199
  %v2201 = vmul.f32 1.0, %v2200
  %v2202 = vtanh.pop %v2195
  %v2203 = vmul.f32 %v2201, %v1940
  %2205 = vrot.lane.b32.xlu0 %v2202, 116
  %v2206 = vpop.permute.xlu0 %2205
  %v2208 = vmul.f32 %v2201, %v2206
  %2210 = vrot.lane.b32.xlu0 %v2208, 6
  %v2211 = vpop.permute.xlu0 %2210
  %v2213 = vadd.f32 %v2203, %v2211
  %v2214 = vtanh.pop %v2213
  %2216 = vrot.lane.b32.xlu0 %v2214, 12
  %v2217 = vpop.permute.xlu0 %2216
  %v2219 = vmul.f32 %v2201, %v2217
  %2221 = vrot.lane.b32.xlu0 %v2219, 110
  %v2222 = vpop.permute.xlu0 %2221
  %v2223 = vsel %vm128, %v2222, 0
  %2225 = vmatprep.subr.mxu0 0.0
  %2226 = vmatpush1.msra.mxu0 %v311
  %2227 = vmatprep.subr.mxu0 0.0
  %2228 = vmatpush1.msra.mxu0 0.0
  %2229 = vmatprep.subr.mxu0 0.0
  %2230 = vmatpush1.msra.mxu0 0.0
  %2231 = vmatprep.subr.mxu0 0.0
  %2232 = vmatpush1.msra.mxu0 0.0
  %2233 = vmatprep.subr.mxu0 0.0
  %2234 = vmatpush1.msra.mxu0 0.0
  %2235 = vmatprep.subr.mxu0 0.0
  %2236 = vmatpush1.msra.mxu0 0.0
  %2237 = vmatprep.subr.mxu0 0.0
  %2238 = vmatpush1.msra.mxu0 0.0
  %2239 = vmatprep.subr.mxu0 0.0
  %2240 = vmatpush1.msra.mxu0 0.0
  %2241 = vmatprep.subr.mxu0 0.0
  %2242 = vmatpush1.msra.mxu0 0.0
  %2243 = vmatprep.subr.mxu0 0.0
  %2244 = vmatpush1.msra.mxu0 0.0
  %2245 = vmatprep.subr.mxu0 0.0
  %2246 = vmatpush1.msra.mxu0 0.0
  %2247 = vmatprep.subr.mxu0 0.0
  %2248 = vmatpush1.msra.mxu0 0.0
  %2249 = vmatprep.subr.mxu0 0.0
  %2250 = vmatpush1.msra.mxu0 0.0
  %2251 = vmatprep.subr.mxu0 0.0
  %2252 = vmatpush1.msra.mxu0 0.0
  %2253 = vmatprep.subr.mxu0 0.0
  %2254 = vmatpush1.msra.mxu0 0.0
  %2255 = vmatprep.subr.mxu0 0.0
  %2256 = vmatpush1.msra.mxu0 0.0
  %2257 = vmatprep.subr.mxu0 0.0
  %2258 = vmatpush1.msra.mxu0 0.0
  %2259 = vmatprep.subr.mxu0 0.0
  %2260 = vmatpush1.msra.mxu0 0.0
  %2261 = vmatprep.subr.mxu0 0.0
  %2262 = vmatpush1.msra.mxu0 0.0
  %2263 = vmatprep.subr.mxu0 0.0
  %2264 = vmatpush1.msra.mxu0 0.0
  %2265 = vmatprep.subr.mxu0 0.0
  %2266 = vmatpush1.msra.mxu0 0.0
  %2267 = vmatprep.subr.mxu0 0.0
  %2268 = vmatpush1.msra.mxu0 0.0
  %2269 = vmatprep.subr.mxu0 0.0
  %2270 = vmatpush1.msra.mxu0 0.0
  %2271 = vmatprep.subr.mxu0 0.0
  %2272 = vmatpush1.msra.mxu0 0.0
  %2273 = vmatprep.subr.mxu0 0.0
  %2274 = vmatpush1.msra.mxu0 0.0
  %2275 = vmatprep.subr.mxu0 0.0
  %2276 = vmatpush1.msra.mxu0 0.0
  %2277 = vmatprep.subr.mxu0 0.0
  %2278 = vmatpush1.msra.mxu0 0.0
  %2279 = vmatprep.subr.mxu0 0.0
  %2280 = vmatpush1.msra.mxu0 0.0
  %2281 = vmatprep.subr.mxu0 0.0
  %2282 = vmatpush1.msra.mxu0 0.0
  %2283 = vmatprep.subr.mxu0 0.0
  %2284 = vmatpush1.msra.mxu0 0.0
  %2285 = vmatprep.subr.mxu0 0.0
  %2286 = vmatpush1.msra.mxu0 0.0
  %2287 = vmatprep.subr.mxu0 0.0
  %2288 = vmatpush1.msra.mxu0 0.0
  %2289 = vmatprep.mubr.f32.mxu0 0.0
  %2290 = vmatmul.mubr.f32.gmra.mrb[0].mxu0 %v2223
  %v2291 = vpop.f32.mrb[0].mxu0
  %v2292 = vadd.f32 0.0, %v2291
  %v2293 = vpop.f32.mrb[0].mxu0
  %2294 = vdwg.mxu0
  %v2295 = vadd.f32 %v2121, %v2292
  %v2296 = vxor.u32 %v2295, 2147483648
  %v2297 = vmul.f32 %v2296, 1.442695
  %v2298 = vpow.pop %v2297
  %v2299 = vadd.f32 %v2298, 1.0
  %v2300 = vrcp.pop %v2299
  %v2301 = vmul.f32 1.0, %v2300
  %v2302 = vtanh.pop %v2295
  %v2303 = vmul.f32 %v2301, %v2040
  %2305 = vrot.lane.b32.xlu0 %v2302, 116
  %v2306 = vpop.permute.xlu0 %2305
  %v2308 = vmul.f32 %v2301, %v2306
  %2310 = vrot.lane.b32.xlu0 %v2308, 6
  %v2311 = vpop.permute.xlu0 %2310
  %v2313 = vadd.f32 %v2303, %v2311
  %v2314 = vtanh.pop %v2313
  %2316 = vrot.lane.b32.xlu0 %v2314, 12
  %v2317 = vpop.permute.xlu0 %2316
  %v2319 = vmul.f32 %v2301, %v2317
  %2321 = vrot.lane.b32.xlu0 %v2319, 110
  %v2322 = vpop.permute.xlu0 %2321
  %2324 = vst.msk [vmem:[#allocation3 + $0xe] sm:$0x3] %vm412, %v2322
  %v2325 = vld [vmem:[%s5] sm:$0x3f]
  %v2326 = vld [vmem:[%s5 + $0x6] sm:$0x1]
  %v2327 = vld [vmem:[#allocation3] sm:$0xff]
  %v2328 = vld [vmem:[#allocation3 + $0x8] sm:$0xff]
  %v2329 = vlaneseq
  %v2330 = vshrl.u32 %v2329, 7
  %v2331 = vsub.s32 0, %v2330
  %v2332 = vrot.slane %v2326, %v2331
  %v2334 = vsel %vm128, %v2327, 0
  %v2337 = vsel %vm128, %v2328, 0
  %v2340 = vsel %vm132, %v2325, 0
  %2342 = vmatprep.subr.mxu0 0.0
  %2343 = vmatpush1.msra.mxu0 %v2340
  %2344 = vmatprep.subr.mxu0 0.0
  %2345 = vmatpush1.msra.mxu0 0.0
  %2346 = vmatprep.subr.mxu0 0.0
  %2347 = vmatpush1.msra.mxu0 0.0
  %2348 = vmatprep.subr.mxu0 0.0
  %2349 = vmatpush1.msra.mxu0 0.0
  %2350 = vmatprep.subr.mxu0 0.0
  %2351 = vmatpush1.msra.mxu0 0.0
  %2352 = vmatprep.subr.mxu0 0.0
  %2353 = vmatpush1.msra.mxu0 0.0
  %2354 = vmatprep.subr.mxu0 0.0
  %2355 = vmatpush1.msra.mxu0 0.0
  %2356 = vmatprep.subr.mxu0 0.0
  %2357 = vmatpush1.msra.mxu0 0.0
  %2358 = vmatprep.subr.mxu0 0.0
  %2359 = vmatpush1.msra.mxu0 0.0
  %2360 = vmatprep.subr.mxu0 0.0
  %2361 = vmatpush1.msra.mxu0 0.0
  %2362 = vmatprep.subr.mxu0 0.0
  %2363 = vmatpush1.msra.mxu0 0.0
  %2364 = vmatprep.subr.mxu0 0.0
  %2365 = vmatpush1.msra.mxu0 0.0
  %2366 = vmatprep.subr.mxu0 0.0
  %2367 = vmatpush1.msra.mxu0 0.0
  %2368 = vmatprep.subr.mxu0 0.0
  %2369 = vmatpush1.msra.mxu0 0.0
  %2370 = vmatprep.subr.mxu0 0.0
  %2371 = vmatpush1.msra.mxu0 0.0
  %2372 = vmatprep.subr.mxu0 0.0
  %2373 = vmatpush1.msra.mxu0 0.0
  %2374 = vmatprep.subr.mxu0 0.0
  %2375 = vmatpush1.msra.mxu0 0.0
  %2376 = vmatprep.subr.mxu0 0.0
  %2377 = vmatpush1.msra.mxu0 0.0
  %2378 = vmatprep.subr.mxu0 0.0
  %2379 = vmatpush1.msra.mxu0 0.0
  %2380 = vmatprep.subr.mxu0 0.0
  %2381 = vmatpush1.msra.mxu0 0.0
  %2382 = vmatprep.subr.mxu0 0.0
  %2383 = vmatpush1.msra.mxu0 0.0
  %2384 = vmatprep.subr.mxu0 0.0
  %2385 = vmatpush1.msra.mxu0 0.0
  %2386 = vmatprep.subr.mxu0 0.0
  %2387 = vmatpush1.msra.mxu0 0.0
  %2388 = vmatprep.subr.mxu0 0.0
  %2389 = vmatpush1.msra.mxu0 0.0
  %2390 = vmatprep.subr.mxu0 0.0
  %2391 = vmatpush1.msra.mxu0 0.0
  %2392 = vmatprep.subr.mxu0 0.0
  %2393 = vmatpush1.msra.mxu0 0.0
  %2394 = vmatprep.subr.mxu0 0.0
  %2395 = vmatpush1.msra.mxu0 0.0
  %2396 = vmatprep.subr.mxu0 0.0
  %2397 = vmatpush1.msra.mxu0 0.0
  %2398 = vmatprep.subr.mxu0 0.0
  %2399 = vmatpush1.msra.mxu0 0.0
  %2400 = vmatprep.subr.mxu0 0.0
  %2401 = vmatpush1.msra.mxu0 0.0
  %2402 = vmatprep.subr.mxu0 0.0
  %2403 = vmatpush1.msra.mxu0 0.0
  %2404 = vmatprep.subr.mxu0 0.0
  %2405 = vmatpush1.msra.mxu0 0.0
  %2406 = vmatprep.mubr.f32.mxu0 0.0
  %2407 = vmatmul.mubr.f32.gmra.mrb[0].mxu0 %v2334
  %v2408 = vpop.f32.mrb[0].mxu0
  %v2409 = vadd.f32 %v2332, %v2408
  %v2410 = vpop.f32.mrb[0].mxu0
  %2411 = vmatprep.mubr.f32.mxu0 0.0
  %2412 = vmatmul.mubr.f32.gmra.mrb[0].mxu0 %v2337
  %v2413 = vpop.f32.mrb[0].mxu0
  %v2414 = vadd.f32 %v2332, %v2413
  %v2415 = vpop.f32.mrb[0].mxu0
  %2416 = vdwg.mxu0
  %vm2417 = vcmask 7168
  %2418 = vst.msk [vmem:[%s6] sm:$0xff] %vm2417, %v2409
  %2419 = vst.msk [vmem:[%s6 + $0x8] sm:$0xff] %vm2417, %v2414
  // Predicated region
  $region26: #{tpu_custom_call.1} parent=0 // pred_check
    _
  $region27: #{tpu_custom_call.1} parent=0 // pred_check_branch
    %2421 = sbr.rel (0) target = $region29
  $region28: #{tpu_custom_call.1} parent=0 // pred_region
    _
  $region29: #{tpu_custom_call.1} parent=0 // pred_fallthru
    _
  // Predicated region
  $region30: #{tpu_custom_call.1} parent=0 // pred_check
    _
  $region31: #{tpu_custom_call.1} parent=0 // pred_check_branch
    %2423 = sbr.rel (0) target = $region33
  $region32: #{tpu_custom_call.1} parent=0 // pred_region
    _
  $region33: #{tpu_custom_call.1} parent=0 // pred_fallthru
    _

</llo_original>
